<compile_context>
chip_gen: v7x
topology: tpu7x:2x2x1
jax: 0.10.0
libtpu: 0.0.40
codegen_flags: <defaults>
</compile_context>

<pallas_src>
import functools

import jax
import jax.numpy as jnp
from jax.experimental import pallas as pl
from jax.experimental.pallas import tpu as pltpu

INPUT_DIM = 342          # env.observation_spec().shape[0]
PADDED_INPUT_DIM = 384   # 3 * 128, lane-aligned K for the first matmul
FC1_DIMS = 1024
FC2_DIMS = 512
OUT_DIM = 1


def critic_kernel(x_ref, w1_ref, s1_ref, b1_ref, w2_ref, s2_ref, b2_ref,
                  w3_ref, b3_ref, o_ref, xpad_ref):
    # x:   (tb, 342) f32 (raw observation tile)
    # w1:  (384, 1024) int8, s1/b1: (1, 1024) f32
    # w2:  (1024, 512) int8, s2/b2: (1, 512) f32
    # w3:  (1, 512) f32 row,  b3: (1,) f32 in SMEM
    # o:   (tb, 1) f32
    # xpad: (tb, 384) bf16 VMEM scratch (persists across grid steps)

    # Zero the lane-pad columns once; they are never overwritten afterwards.
    @pl.when(pl.program_id(0) == 0)
    def _():
        xpad_ref[...] = jnp.zeros_like(xpad_ref)

    # Fused 342 -> 384 zero-pad + f32 -> bf16 cast (masked static-slice store).
    xpad_ref[:, :INPUT_DIM] = x_ref[...].astype(jnp.bfloat16)
    x = xpad_ref[...]

    # fc1: int8 weights widened to bf16 on the VPU (exact), bf16 MXU matmul with f32
    # accumulation, per-output-channel dequant scale applied on the f32 accumulator.
    w1 = w1_ref[...].astype(jnp.bfloat16)
    h1 = jnp.dot(x, w1, preferred_element_type=jnp.float32) * s1_ref[...] + b1_ref[...]
    h1 = jnp.maximum(h1, 0.0).astype(jnp.bfloat16)

    # fc2: same int8 -> bf16 -> MXU -> f32 -> scale path.
    w2 = w2_ref[...].astype(jnp.bfloat16)
    h2 = jnp.dot(h1, w2, preferred_element_type=jnp.float32) * s2_ref[...] + b2_ref[...]
    h2 = jnp.maximum(h2, 0.0)

    # fc3 (512 -> 1): VPU elementwise multiply + XLU lane reduce (kept off the MXU).
    o_ref[...] = jnp.sum(h2 * w3_ref[...], axis=-1, keepdims=True) + b3_ref[0]


@functools.lru_cache(maxsize=None)
def _build_critic_call(tb, n_tiles, core_parallel):
    """Builds (and caches) the pallas_call for a given tiling / core-sharding mode."""
    if core_parallel:
        sem = (pltpu.CORE_PARALLEL,)        # shard batch tiles across TCs (v7x)
    elif n_tiles > 1:
        sem = (pltpu.PARALLEL,)
    else:
        sem = (pltpu.ARBITRARY,)
    return pl.pallas_call(
        critic_kernel,
        out_shape=jax.ShapeDtypeStruct((n_tiles * tb, OUT_DIM), jnp.float32),
        grid_spec=pltpu.PrefetchScalarGridSpec(
            num_scalar_prefetch=0,
            grid=(n_tiles,),
            in_specs=[
                pl.BlockSpec((tb, INPUT_DIM), lambda i: (i, 0)),               # x tile (raw f32)
                pl.BlockSpec((PADDED_INPUT_DIM, FC1_DIMS), lambda i: (0, 0)),  # w1 int8 (resident)
                pl.BlockSpec((1, FC1_DIMS), lambda i: (0, 0)),                 # s1
                pl.BlockSpec((1, FC1_DIMS), lambda i: (0, 0)),                 # b1
                pl.BlockSpec((FC1_DIMS, FC2_DIMS), lambda i: (0, 0)),          # w2 int8 (resident)
                pl.BlockSpec((1, FC2_DIMS), lambda i: (0, 0)),                 # s2
                pl.BlockSpec((1, FC2_DIMS), lambda i: (0, 0)),                 # b2
                pl.BlockSpec((1, FC2_DIMS), lambda i: (0, 0)),                 # w3 as [1, 512]
                pl.BlockSpec(memory_space=pltpu.MemorySpace.SMEM),             # b3 scalar
            ],
            out_specs=pl.BlockSpec((tb, OUT_DIM), lambda i: (i, 0)),
            scratch_shapes=[pltpu.VMEM((tb, PADDED_INPUT_DIM), jnp.bfloat16)],
        ),
        compiler_params=pltpu.CompilerParams(
            dimension_semantics=sem,
            # Default scoped limit is only 16 MiB on v5e; 32 MiB covers tb=1024
            # comfortably on every generation (peak live footprint is well below it).
            vmem_limit_bytes=32 * 1024 * 1024,
        ),
    )


_CORE_PARALLEL_WORKS = None  # tri-state cache: None = untested, True/False = known


def critic_forward(state, params, *, batch_tile=1024):
    """state: (B, 342) f32. Returns (B, 1) f32."""
    global _CORE_PARALLEL_WORKS
    w1_q, s1, b1, w2_q, s2, b2, w3, b3 = params
    B, F = state.shape
    assert F == INPUT_DIM, F

    if B <= batch_tile:
        # Single full-array tile: no batch padding, no extra wrapper-side copy.
        tb, n_tiles = B, 1
        x = state
    else:
        # Fit the tile to the batch so the last tile isn't mostly padding.
        n_tiles = pl.cdiv(B, batch_tile)
        tb = -(-(-(-B // n_tiles)) // 8) * 8        # round_up(cdiv(B, n_tiles), 8)
        b_pad = n_tiles * tb
        x = state if b_pad == B else jnp.pad(state, ((0, b_pad - B), (0, 0)))

    args = (x, w1_q, s1, b1, w2_q, s2, b2, w3, b3)

    # Try to shard batch tiles across TensorCores (v7x); fall back to "parallel"
    # if this chip / compiler rejects CORE_PARALLEL.
    if n_tiles >= 2 and _CORE_PARALLEL_WORKS is not False:
        try:
            out = jax.block_until_ready(_build_critic_call(tb, n_tiles, True)(*args))
            _CORE_PARALLEL_WORKS = True
        except Exception:
            _CORE_PARALLEL_WORKS = False
            out = _build_critic_call(tb, n_tiles, False)(*args)
    else:
        out = _build_critic_call(tb, n_tiles, False)(*args)
    return out[:B]


def _quantize_per_channel(w):
    """Symmetric per-output-channel int8 quantization. Returns (q_int8, scale_f32[1, out])."""
    amax = jnp.max(jnp.abs(w), axis=0, keepdims=True)
    scale = jnp.maximum(amax, 1e-8) / 127.0
    q = jnp.clip(jnp.round(w / scale), -127.0, 127.0).astype(jnp.int8)
    return q, scale.astype(jnp.float32)


def init_params(key):
    """Deterministic init mimicking nn.Linear default (uniform +-1/sqrt(fan_in)).

    Storage layout (TPU-friendly, transposed vs PyTorch's [out, in]):
      w1_q: (384, 1024) int8 (rows 342..383 zero)   s1: (1, 1024) f32   b1: (1, 1024) f32
      w2_q: (1024, 512) int8                        s2: (1, 512)  f32   b2: (1, 512)  f32
      w3:   (1, 512) f32 (fc3 weight as a row for the VPU reduce)       b3: (1,)      f32
    """
    ks = jax.random.split(key, 6)

    def linear(kw, kb, fan_in, fan_out):
        bound = float(fan_in) ** -0.5
        w = jax.random.uniform(kw, (fan_in, fan_out), jnp.float32, -bound, bound)
        b = jax.random.uniform(kb, (fan_out,), jnp.float32, -bound, bound)
        return w, b

    w1, b1 = linear(ks[0], ks[1], INPUT_DIM, FC1_DIMS)
    w2, b2 = linear(ks[2], ks[3], FC1_DIMS, FC2_DIMS)
    w3, b3 = linear(ks[4], ks[5], FC2_DIMS, OUT_DIM)

    w1_pad = jnp.zeros((PADDED_INPUT_DIM, FC1_DIMS), jnp.float32).at[:INPUT_DIM].set(w1)
    w1_q, s1 = _quantize_per_channel(w1_pad)
    w2_q, s2 = _quantize_per_channel(w2)

    return (w1_q, s1, b1.reshape(1, -1),
            w2_q, s2, b2.reshape(1, -1),
            w3.T, b3)


def critic_reference(state, params):
    """Pure-JAX reference using the exact same stored (quantized) weights / op order."""
    w1_q, s1, b1, w2_q, s2, b2, w3, b3 = params
    xb = state.astype(jnp.bfloat16)
    xb = jnp.pad(xb, ((0, 0), (0, PADDED_INPUT_DIM - INPUT_DIM)))
    h1 = jnp.dot(xb, w1_q.astype(jnp.bfloat16),
                 preferred_element_type=jnp.float32) * s1 + b1
    h1 = jnp.maximum(h1, 0.0).astype(jnp.bfloat16)
    h2 = jnp.dot(h1, w2_q.astype(jnp.bfloat16),
                 preferred_element_type=jnp.float32) * s2 + b2
    h2 = jnp.maximum(h2, 0.0)
    return jnp.sum(h2 * w3, axis=-1, keepdims=True) + b3


if __name__ == "__main__":
    key = jax.random.PRNGKey(0)
    k_params, k_state = jax.random.split(key)
    params = init_params(k_params)

    # Small batch (B=2): latency path — single full-array tile, no padding copy.
    B = 2
    state = jax.random.normal(k_state, (B, INPUT_DIM), dtype=jnp.float32)
    out = jax.block_until_ready(critic_forward(state, params))
    ref = critic_reference(state, params)
    assert out.shape == (B, OUT_DIM), out.shape
    assert jnp.allclose(out, ref, atol=5e-3, rtol=5e-3), (out, ref)

    # Mid batch (B=300): still a single tile, sized to the batch (no padded rows).
    B2 = 300
    state2 = jax.random.normal(jax.random.PRNGKey(1), (B2, INPUT_DIM), dtype=jnp.float32)
    out2 = jax.block_until_ready(critic_forward(state2, params))
    ref2 = critic_reference(state2, params)
    assert out2.shape == (B2, OUT_DIM), out2.shape
    assert jnp.allclose(out2, ref2, atol=5e-3, rtol=5e-3), (out2, ref2)

    # Multi-tile path: exercises the batch grid, row padding and the CORE_PARALLEL
    # attempt (with automatic fallback to "parallel" on chips/compilers without it).
    out3 = jax.block_until_ready(critic_forward(state2, params, batch_tile=128))
    assert out3.shape == (B2, OUT_DIM), out3.shape
    assert jnp.allclose(out3, ref2, atol=5e-3, rtol=5e-3), (out3, ref2)

    print("KERNEL_OK")
</pallas_src>

<mosaic_0001>
module attributes {stable_mosaic.version = 11 : i64} {
  func.func @critic_kernel(%arg0: i32, %arg1: memref<2x342xf32, #tpu.memory_space<vmem>>, %arg2: memref<384x1024xi8, #tpu.memory_space<vmem>>, %arg3: memref<1x1024xf32, #tpu.memory_space<vmem>>, %arg4: memref<1x1024xf32, #tpu.memory_space<vmem>>, %arg5: memref<1024x512xi8, #tpu.memory_space<vmem>>, %arg6: memref<1x512xf32, #tpu.memory_space<vmem>>, %arg7: memref<1x512xf32, #tpu.memory_space<vmem>>, %arg8: memref<1x512xf32, #tpu.memory_space<vmem>>, %arg9: memref<1xf32, #tpu.memory_space<smem>>, %arg10: memref<2x1xf32, #tpu.memory_space<vmem>>, %arg11: memref<2x384xbf16, #tpu.memory_space<vmem>>) attributes {dimension_semantics = [#tpu.dimension_semantics<arbitrary>], iteration_bounds = array<i64: 1>, scalar_prefetch = 0 : i64, scratch_operands = 1 : i64, tpu.core_type = #tpu.core_type<tc>, window_params = [{transform_indices = @transform_0, window_bounds = array<i64: 2, 342>}, {pipeline_mode = #tpu.pipeline_mode<synchronous>, transform_indices = @transform_1, window_bounds = array<i64: 384, 1024>}, {pipeline_mode = #tpu.pipeline_mode<synchronous>, transform_indices = @transform_2, window_bounds = array<i64: 1, 1024>}, {pipeline_mode = #tpu.pipeline_mode<synchronous>, transform_indices = @transform_3, window_bounds = array<i64: 1, 1024>}, {pipeline_mode = #tpu.pipeline_mode<synchronous>, transform_indices = @transform_4, window_bounds = array<i64: 1024, 512>}, {pipeline_mode = #tpu.pipeline_mode<synchronous>, transform_indices = @transform_5, window_bounds = array<i64: 1, 512>}, {pipeline_mode = #tpu.pipeline_mode<synchronous>, transform_indices = @transform_6, window_bounds = array<i64: 1, 512>}, {pipeline_mode = #tpu.pipeline_mode<synchronous>, transform_indices = @transform_7, window_bounds = array<i64: 1, 512>}, {transform_indices = @transform_8, window_bounds = array<i64: 1>}, {transform_indices = @transform_9, window_bounds = array<i64: 2, 1>}]} {
    %c0_i32 = arith.constant 0 : i32
    %0 = arith.cmpi eq, %arg0, %c0_i32 : i32
    %1 = arith.extui %0 : i1 to i32
    %c0_i32_0 = arith.constant 0 : i32
    %2 = arith.cmpi ne, %1, %c0_i32_0 : i32
    scf.if %2 {
      %cst_27 = arith.constant 0.000000e+00 : bf16
      %39 = vector.broadcast %cst_27 : bf16 to vector<2x384xbf16>
      %c0_28 = arith.constant 0 : index
      %c0_29 = arith.constant 0 : index
      %40 = vector.load %arg11[%c0_28, %c0_29] : memref<2x384xbf16, #tpu.memory_space<vmem>>, vector<2x384xbf16>
      tpu.vector_store %arg11[%c0_28, %c0_29], %39 {strides = array<i32>} : memref<2x384xbf16, #tpu.memory_space<vmem>>, vector<2x384xbf16>,
    } else {
    }
    %c0 = arith.constant 0 : index
    %c0_1 = arith.constant 0 : index
    %3 = vector.load %arg1[%c0, %c0_1] : memref<2x342xf32, #tpu.memory_space<vmem>>, vector<2x342xf32>
    %4 = arith.truncf %3 : vector<2x342xf32> to vector<2x342xbf16>
    %c0_2 = arith.constant 0 : index
    %c0_3 = arith.constant 0 : index
    %5 = vector.load %arg11[%c0_2, %c0_3] : memref<2x384xbf16, #tpu.memory_space<vmem>>, vector<2x342xbf16>
    tpu.vector_store %arg11[%c0_2, %c0_3], %4 {strides = array<i32>} : memref<2x384xbf16, #tpu.memory_space<vmem>>, vector<2x342xbf16>,
    %c0_4 = arith.constant 0 : index
    %c0_5 = arith.constant 0 : index
    %6 = vector.load %arg11[%c0_4, %c0_5] : memref<2x384xbf16, #tpu.memory_space<vmem>>, vector<2x384xbf16>
    %c0_6 = arith.constant 0 : index
    %c0_7 = arith.constant 0 : index
    %7 = vector.load %arg2[%c0_6, %c0_7] : memref<384x1024xi8, #tpu.memory_space<vmem>>, vector<384x1024xi8>
    %8 = arith.sitofp %7 : vector<384x1024xi8> to vector<384x1024xbf16>
    %cst = arith.constant dense<0.000000e+00> : vector<2x1024xf32>
    %9 = tpu.matmul %6, %8, %cst {dimension_numbers = #tpu.dot_dimension_numbers<[1], [0], [0], [1], [0, 0, 1, 1], [], []>} : vector<2x384xbf16>, vector<384x1024xbf16>, vector<2x1024xf32> -> vector<2x1024xf32>
    %c0_8 = arith.constant 0 : index
    %c0_9 = arith.constant 0 : index
    %10 = vector.load %arg3[%c0_8, %c0_9] : memref<1x1024xf32, #tpu.memory_space<vmem>>, vector<1x1024xf32>
    %11 = vector.broadcast %10 : vector<1x1024xf32> to vector<2x1024xf32>
    %12 = arith.mulf %9, %11 : vector<2x1024xf32>
    %c0_10 = arith.constant 0 : index
    %c0_11 = arith.constant 0 : index
    %13 = vector.load %arg4[%c0_10, %c0_11] : memref<1x1024xf32, #tpu.memory_space<vmem>>, vector<1x1024xf32>
    %14 = vector.broadcast %13 : vector<1x1024xf32> to vector<2x1024xf32>
    %15 = arith.addf %12, %14 : vector<2x1024xf32>
    %cst_12 = arith.constant 0.000000e+00 : f32
    %16 = vector.broadcast %cst_12 : f32 to vector<2x1024xf32>
    %17 = arith.maximumf %15, %16 : vector<2x1024xf32>
    %18 = arith.truncf %17 : vector<2x1024xf32> to vector<2x1024xbf16>
    %c0_13 = arith.constant 0 : index
    %c0_14 = arith.constant 0 : index
    %19 = vector.load %arg5[%c0_13, %c0_14] : memref<1024x512xi8, #tpu.memory_space<vmem>>, vector<1024x512xi8>
    %20 = arith.sitofp %19 : vector<1024x512xi8> to vector<1024x512xbf16>
    %cst_15 = arith.constant dense<0.000000e+00> : vector<2x512xf32>
    %21 = tpu.matmul %18, %20, %cst_15 {dimension_numbers = #tpu.dot_dimension_numbers<[1], [0], [0], [1], [0, 0, 1, 1], [], []>} : vector<2x1024xbf16>, vector<1024x512xbf16>, vector<2x512xf32> -> vector<2x512xf32>
    %c0_16 = arith.constant 0 : index
    %c0_17 = arith.constant 0 : index
    %22 = vector.load %arg6[%c0_16, %c0_17] : memref<1x512xf32, #tpu.memory_space<vmem>>, vector<1x512xf32>
    %23 = vector.broadcast %22 : vector<1x512xf32> to vector<2x512xf32>
    %24 = arith.mulf %21, %23 : vector<2x512xf32>
    %c0_18 = arith.constant 0 : index
    %c0_19 = arith.constant 0 : index
    %25 = vector.load %arg7[%c0_18, %c0_19] : memref<1x512xf32, #tpu.memory_space<vmem>>, vector<1x512xf32>
    %26 = vector.broadcast %25 : vector<1x512xf32> to vector<2x512xf32>
    %27 = arith.addf %24, %26 : vector<2x512xf32>
    %cst_20 = arith.constant 0.000000e+00 : f32
    %28 = vector.broadcast %cst_20 : f32 to vector<2x512xf32>
    %29 = arith.maximumf %27, %28 : vector<2x512xf32>
    %c0_21 = arith.constant 0 : index
    %c0_22 = arith.constant 0 : index
    %30 = vector.load %arg8[%c0_21, %c0_22] : memref<1x512xf32, #tpu.memory_space<vmem>>, vector<1x512xf32>
    %31 = vector.broadcast %30 : vector<1x512xf32> to vector<2x512xf32>
    %32 = arith.mulf %29, %31 : vector<2x512xf32>
    %cst_23 = arith.constant dense<0.000000e+00> : vector<2xf32>
    %33 = vector.multi_reduction <add>, %32, %cst_23 [1] : vector<2x512xf32> to vector<2xf32>
    %34 = vector.shape_cast %33 : vector<2xf32> to vector<2x1xf32>
    %c0_24 = arith.constant 0 : index
    %35 = memref.load %arg9[%c0_24] : memref<1xf32, #tpu.memory_space<smem>>
    %36 = vector.broadcast %35 : f32 to vector<2x1xf32>
    %37 = arith.addf %34, %36 : vector<2x1xf32>
    %c0_25 = arith.constant 0 : index
    %c0_26 = arith.constant 0 : index
    %38 = vector.load %arg10[%c0_25, %c0_26] : memref<2x1xf32, #tpu.memory_space<vmem>>, vector<2x1xf32>
    tpu.vector_store %arg10[%c0_25, %c0_26], %37 {strides = array<i32>} : memref<2x1xf32, #tpu.memory_space<vmem>>, vector<2x1xf32>,
    return
  }
  func.func @transform_0(%arg0: i32) -> (i32, i32) {
    %c0_i32 = arith.constant 0 : i32
    %c0_i32_0 = arith.constant 0 : i32
    return %arg0, %c0_i32 : i32, i32
  }
  func.func @transform_1(%arg0: i32) -> (i32, i32) {
    %c0_i32 = arith.constant 0 : i32
    %c0_i32_0 = arith.constant 0 : i32
    %c0_i32_1 = arith.constant 0 : i32
    return %c0_i32, %c0_i32_0 : i32, i32
  }
  func.func @transform_2(%arg0: i32) -> (i32, i32) {
    %c0_i32 = arith.constant 0 : i32
    %c0_i32_0 = arith.constant 0 : i32
    %c0_i32_1 = arith.constant 0 : i32
    return %c0_i32, %c0_i32_0 : i32, i32
  }
  func.func @transform_3(%arg0: i32) -> (i32, i32) {
    %c0_i32 = arith.constant 0 : i32
    %c0_i32_0 = arith.constant 0 : i32
    %c0_i32_1 = arith.constant 0 : i32
    return %c0_i32, %c0_i32_0 : i32, i32
  }
  func.func @transform_4(%arg0: i32) -> (i32, i32) {
    %c0_i32 = arith.constant 0 : i32
    %c0_i32_0 = arith.constant 0 : i32
    %c0_i32_1 = arith.constant 0 : i32
    return %c0_i32, %c0_i32_0 : i32, i32
  }
  func.func @transform_5(%arg0: i32) -> (i32, i32) {
    %c0_i32 = arith.constant 0 : i32
    %c0_i32_0 = arith.constant 0 : i32
    %c0_i32_1 = arith.constant 0 : i32
    return %c0_i32, %c0_i32_0 : i32, i32
  }
  func.func @transform_6(%arg0: i32) -> (i32, i32) {
    %c0_i32 = arith.constant 0 : i32
    %c0_i32_0 = arith.constant 0 : i32
    %c0_i32_1 = arith.constant 0 : i32
    return %c0_i32, %c0_i32_0 : i32, i32
  }
  func.func @transform_7(%arg0: i32) -> (i32, i32) {
    %c0_i32 = arith.constant 0 : i32
    %c0_i32_0 = arith.constant 0 : i32
    %c0_i32_1 = arith.constant 0 : i32
    return %c0_i32, %c0_i32_0 : i32, i32
  }
  func.func @transform_8(%arg0: i32) -> i32 {
    %c0_i32 = arith.constant 0 : i32
    %c0_i32_0 = arith.constant 0 : i32
    return %c0_i32 : i32
  }
  func.func @transform_9(%arg0: i32) -> (i32, i32) {
    %c0_i32 = arith.constant 0 : i32
    %c0_i32_0 = arith.constant 0 : i32
    return %arg0, %c0_i32 : i32, i32
  }
}

</mosaic_0001>

<llo_original>
// kernel: tpu_custom_call.1
$region0: #{tpu_custom_call.1}
  #allocation0 [shape = 'u32[]', space=smem, size = 0x4, offset = 0x4, fixed_abs, tag = 'smem constant byte address 0x4 - core index']
  #allocation1 [shape = 'u32[144,128]{1,0:T(1,128)}', space=vmem, size = 0x12000, scoped, tag = 'internal scratch']
  #allocation2 [shape = 'bf16[2,384]{1,0:T(2,128)(2,1)}', space=vmem, size = 0x600, scoped, tag = 'scratch operand']
  #allocation3 [shape = 'f32[1]{0:T(128)S(6)}', space=smem, size = 0x200, scoped, tag = 'scoped memory for tpu_custom_call.1']
  %s0 = inlined_call_operand.hbm [shape: f32[2,342], index: 0, kind: input, shape index: {}]
  %s1 = inlined_call_operand.hbm [shape: s8[384,1024], index: 1, kind: input, shape index: {}]
  %s2 = inlined_call_operand.vmem [shape: f32[1,1024], index: 2, kind: input, shape index: {}]
  %s3 = inlined_call_operand.hbm [shape: f32[1,1024], index: 3, kind: input, shape index: {}]
  %s4 = inlined_call_operand.hbm [shape: s8[1024,512], index: 4, kind: input, shape index: {}]
  %s5 = inlined_call_operand.vmem [shape: f32[1,512], index: 5, kind: input, shape index: {}]
  %s6 = inlined_call_operand.vmem [shape: f32[1,512], index: 6, kind: input, shape index: {}]
  %s7 = inlined_call_operand.vmem [shape: f32[1,512], index: 7, kind: input, shape index: {}]
  %s8 = inlined_call_operand.<no memory space> [shape: f32[1], index: 8, kind: input, shape index: {}]
  %s9 = inlined_call_operand.vmem [shape: f32[2,1], index: 9, kind: output, shape index: {}]
  %s10 = sld [smem:[#allocation0]]
  $region66: #{tpu_custom_call.1} parent=0
    _
  %s12 = ssub.s32 1, %s10
  %s13 = scalar_select 0, %s12, %s10
  %14 = sst [smem:[#allocation3]] %s8
  $region1: #{tpu_custom_call.1} parent=0
    #allocation4 [shape = 'u8[3072]{0}', space=vmem, size = 0xc00, scoped, tag = 'input window, operand 0, single buffered']
    #allocation5 [shape = 's32[1]{0}', space=sflag, size = 0x4, scoped, tag = 'scoped memory for tpu_custom_call.1']
    #allocation6 [shape = 'u8[393216]{0}', space=vmem, size = 0x60000, scoped, tag = 'input window, operand 1, single buffered']
    #allocation7 [shape = 's32[1]{0}', space=sflag, size = 0x4, scoped, tag = 'scoped memory for tpu_custom_call.1']
    #allocation8 [shape = 'u8[4096]{0}', space=vmem, size = 0x1000, scoped, tag = 'input window, operand 3, single buffered']
    #allocation9 [shape = 'u8[524288]{0}', space=vmem, size = 0x80000, scoped, tag = 'input window, operand 4, single buffered']
    #allocation10 [shape = 's32[1]{0}', space=sflag, size = 0x4, scoped, tag = 'scoped memory for tpu_custom_call.1']
    %15 = vsyncpa [#allocation5], 0
    %16 = vsyncpa [#allocation7], 0
    %17 = vsyncpa [#allocation10], 0
    // Predicated region
    $region2: #{tpu_custom_call.1} parent=1 // pred_check
      _
    $region3: #{tpu_custom_call.1} parent=1 // pred_check_branch
      %19 = sbr.rel (0) target = $region5
    $region4: #{tpu_custom_call.1} parent=1 // pred_region
      %s21 = ssub.s32 96, 96
      %22 = vsyncadd [#allocation5], %s21
      %s24 = sshll.u32 [#allocation4], 4
      %s25 = int_to_ptr.vmem [resolvable:$true] %s24
      %27 = dma.hbm_to_vmem [thread:$0]  %s0, 96, %s25, [#allocation5]
    $region5: #{tpu_custom_call.1} parent=1 // pred_fallthru
      _
    // Predicated region
    $region6: #{tpu_custom_call.1} parent=1 // pred_check
      _
    $region7: #{tpu_custom_call.1} parent=1 // pred_check_branch
      %29 = sbr.rel (0) target = $region9
    $region8: #{tpu_custom_call.1} parent=1 // pred_region
      %s31 = ssub.s32 12288, 12288
      %32 = vsyncadd [#allocation7], %s31
      %s33 = sshll.u32 [#allocation6], 4
      %s34 = int_to_ptr.vmem [resolvable:$true] %s33
      %39 = dma.hbm_to_vmem [thread:$0]  %s1, 12288, %s34, [#allocation7], 1024, 1024, 64
    $region9: #{tpu_custom_call.1} parent=1 // pred_fallthru
      _
    // Predicated region
    $region10: #{tpu_custom_call.1} parent=1 // pred_check
      _
    $region11: #{tpu_custom_call.1} parent=1 // pred_check_branch
      %41 = sbr.rel (0) target = $region13
    $region12: #{tpu_custom_call.1} parent=1 // pred_region
      _
    $region13: #{tpu_custom_call.1} parent=1 // pred_fallthru
      _
    // Predicated region
    $region14: #{tpu_custom_call.1} parent=1 // pred_check
      _
    $region15: #{tpu_custom_call.1} parent=1 // pred_check_branch
      %43 = sbr.rel (0) target = $region17
    $region16: #{tpu_custom_call.1} parent=1 // pred_region
      %s45 = ssub.s32 128, 128
      %46 = vsyncadd [#allocation7], %s45
      %s48 = sshll.u32 [#allocation8], 4
      %s49 = int_to_ptr.vmem [resolvable:$true] %s48
      %51 = dma.hbm_to_vmem [thread:$0]  %s3, 128, %s49, [#allocation7]
    $region17: #{tpu_custom_call.1} parent=1 // pred_fallthru
      _
    // Predicated region
    $region18: #{tpu_custom_call.1} parent=1 // pred_check
      _
    $region19: #{tpu_custom_call.1} parent=1 // pred_check_branch
      %53 = sbr.rel (0) target = $region21
    $region20: #{tpu_custom_call.1} parent=1 // pred_region
      %s55 = ssub.s32 16384, 16384
      %56 = vsyncadd [#allocation10], %s55
      %s57 = sshll.u32 [#allocation9], 4
      %s58 = int_to_ptr.vmem [resolvable:$true] %s57
      %63 = dma.hbm_to_vmem [thread:$0]  %s4, 16384, %s58, [#allocation10], 512, 512, 32
    $region21: #{tpu_custom_call.1} parent=1 // pred_fallthru
      _
    // Predicated region
    $region22: #{tpu_custom_call.1} parent=1 // pred_check
      _
    $region23: #{tpu_custom_call.1} parent=1 // pred_check_branch
      %65 = sbr.rel (0) target = $region25
    $region24: #{tpu_custom_call.1} parent=1 // pred_region
      _
    $region25: #{tpu_custom_call.1} parent=1 // pred_fallthru
      _
    // Predicated region
    $region26: #{tpu_custom_call.1} parent=1 // pred_check
      _
    $region27: #{tpu_custom_call.1} parent=1 // pred_check_branch
      %67 = sbr.rel (0) target = $region29
    $region28: #{tpu_custom_call.1} parent=1 // pred_region
      _
    $region29: #{tpu_custom_call.1} parent=1 // pred_fallthru
      _
    // Predicated region
    $region30: #{tpu_custom_call.1} parent=1 // pred_check
      _
    $region31: #{tpu_custom_call.1} parent=1 // pred_check_branch
      %69 = sbr.rel (0) target = $region33
    $region32: #{tpu_custom_call.1} parent=1 // pred_region
      _
    $region33: #{tpu_custom_call.1} parent=1 // pred_fallthru
      _
    // Predicated region
    $region34: #{tpu_custom_call.1} parent=1 // pred_check
      _
    $region35: #{tpu_custom_call.1} parent=1 // pred_check_branch
      %71 = sbr.rel (0) target = $region37
    $region36: #{tpu_custom_call.1} parent=1 // pred_region
      _
    $region37: #{tpu_custom_call.1} parent=1 // pred_fallthru
      _
    // Predicated region
    $region38: #{tpu_custom_call.1} parent=1 // pred_check
      _
    $region39: #{tpu_custom_call.1} parent=1 // pred_check_branch
      %73 = sbr.rel (0) target = $region41
    $region40: #{tpu_custom_call.1} parent=1 // pred_region
      %74 = dma.done [#allocation5], 96
    $region41: #{tpu_custom_call.1} parent=1 // pred_fallthru
      _
    // Predicated region
    $region42: #{tpu_custom_call.1} parent=1 // pred_check
      _
    $region43: #{tpu_custom_call.1} parent=1 // pred_check_branch
      %76 = sbr.rel (0) target = $region45
    $region44: #{tpu_custom_call.1} parent=1 // pred_region
      %77 = dma.done [#allocation7], 12288
    $region45: #{tpu_custom_call.1} parent=1 // pred_fallthru
      _
    // Predicated region
    $region46: #{tpu_custom_call.1} parent=1 // pred_check
      _
    $region47: #{tpu_custom_call.1} parent=1 // pred_check_branch
      %79 = sbr.rel (0) target = $region49
    $region48: #{tpu_custom_call.1} parent=1 // pred_region
      %80 = dma.done [#allocation7], 128
    $region49: #{tpu_custom_call.1} parent=1 // pred_fallthru
      _
    // Predicated region
    $region50: #{tpu_custom_call.1} parent=1 // pred_check
      _
    $region51: #{tpu_custom_call.1} parent=1 // pred_check_branch
      %82 = sbr.rel (0) target = $region53
    $region52: #{tpu_custom_call.1} parent=1 // pred_region
      %83 = dma.done [#allocation10], 16384
    $region53: #{tpu_custom_call.1} parent=1 // pred_fallthru
      _
    %p85 = scmp.eq.s32.totalorder 0, 0
    // Predicated region
    $region54: #{tpu_custom_call.1} parent=1 // pred_check
      %p86 = pneg %p85
    $region55: #{tpu_custom_call.1} parent=1 // pred_check_branch
      %88 = sbr.rel (%p86) target = $region57
    $region56: #{tpu_custom_call.1} parent=1 // pred_region
      %89 = vst [vmem:[#allocation2] sm:$0x7] 0
    $region57: #{tpu_custom_call.1} parent=1 // pred_fallthru
      _
    %v90 = vld [vmem:[#allocation4] sm:$0x3f]
    %v92 = vcombine.high %v90, %v90
    %v94 = vunpack.c.l.s4 1983009808
    %v95 = vunpack.c.0.s8 %v94
    %v96 = vlaneseq
    %v97 = vshrl.u32 %v96, 7
    %v98 = vsub.s32 %v95, %v97
    %v99 = vrot.slane %v90, %v98
    %v101 = vunpack.c.l.s4 1983009808
    %v102 = vunpack.c.0.s8 %v101
    %v103 = vlaneseq
    %v104 = vshrl.u32 %v103, 7
    %v105 = vsub.s32 %v102, %v104
    %v106 = vrot.slane %v92, %v105
    %v107 = vcombine.high %v99, %v99
    %v111 = vpack.c.bf16 %v99, %v99
    %v112 = vpack.c.bf16 %v107, %v107
    %v113 = vpack.c.bf16 %v106, %v106
    %v117 = vcombine.low %v111, %v112
    %v119 = vunpack.c.l.s4 1966171168
    %v120 = vunpack.c.0.s8 %v119
    %v121 = vlaneseq
    %v122 = vshrl.u32 %v121, 7
    %v123 = vsub.s32 %v120, %v122
    %v124 = vrot.slane %v117, %v123
    %v126 = vunpack.c.l.s4 1966171168
    %v127 = vunpack.c.0.s8 %v126
    %v128 = vlaneseq
    %v129 = vshrl.u32 %v128, 7
    %v130 = vsub.s32 %v127, %v129
    %v131 = vrot.slane %v113, %v130
    %v132 = vcombine.low %v124, %v131
    %v134 = vunpack.c.l.s4 1966171168
    %v135 = vunpack.c.0.s8 %v134
    %v136 = vlaneseq
    %v137 = vshrl.u32 %v136, 7
    %v138 = vsub.s32 %v135, %v137
    %v139 = vrot.slane %v132, %v138
    %vm141 = vcmask 1040384
    %vm142 = vcmask 1041409
    %vm143 = vmor %vm142, %vm141
    %vm144 = vcmask 698370
    %vm145 = vmor %vm144, %vm143
    %146 = vst.msk [vmem:[#allocation2] sm:$0x7] %vm145, %v139
    %v147 = vld [vmem:[#allocation2] sm:$0x7]
    %v148 = vld [vmem:[#allocation6] sm:$0xff]
    %v149 = vld [vmem:[#allocation6 + $0x8] sm:$0xff]
    %v150 = vld [vmem:[#allocation6 + $0x10] sm:$0xff]
    %v151 = vld [vmem:[#allocation6 + $0x18] sm:$0xff]
    %v152 = vld [vmem:[#allocation6 + $0x20] sm:$0xff]
    %v153 = vld [vmem:[#allocation6 + $0x28] sm:$0xff]
    %v154 = vld [vmem:[#allocation6 + $0x30] sm:$0xff]
    %v155 = vld [vmem:[#allocation6 + $0x38] sm:$0xff]
    %v156 = vld [vmem:[#allocation6 + $0x40] sm:$0xff]
    %v157 = vld [vmem:[#allocation6 + $0x48] sm:$0xff]
    %v158 = vld [vmem:[#allocation6 + $0x50] sm:$0xff]
    %v159 = vld [vmem:[#allocation6 + $0x58] sm:$0xff]
    %v160 = vld [vmem:[#allocation6 + $0x60] sm:$0xff]
    %v161 = vld [vmem:[#allocation6 + $0x68] sm:$0xff]
    %v162 = vld [vmem:[#allocation6 + $0x70] sm:$0xff]
    %v163 = vld [vmem:[#allocation6 + $0x78] sm:$0xff]
    %v164 = vld [vmem:[#allocation6 + $0x80] sm:$0xff]
    %v165 = vld [vmem:[#allocation6 + $0x88] sm:$0xff]
    %v166 = vld [vmem:[#allocation6 + $0x90] sm:$0xff]
    %v167 = vld [vmem:[#allocation6 + $0x98] sm:$0xff]
    %v168 = vld [vmem:[#allocation6 + $0xa0] sm:$0xff]
    %v169 = vld [vmem:[#allocation6 + $0xa8] sm:$0xff]
    %v170 = vld [vmem:[#allocation6 + $0xb0] sm:$0xff]
    %v171 = vld [vmem:[#allocation6 + $0xb8] sm:$0xff]
    %v172 = vld [vmem:[#allocation6 + $0xc0] sm:$0xff]
    %v173 = vld [vmem:[#allocation6 + $0xc8] sm:$0xff]
    %v174 = vld [vmem:[#allocation6 + $0xd0] sm:$0xff]
    %v175 = vld [vmem:[#allocation6 + $0xd8] sm:$0xff]
    %v176 = vld [vmem:[#allocation6 + $0xe0] sm:$0xff]
    %v177 = vld [vmem:[#allocation6 + $0xe8] sm:$0xff]
    %v178 = vld [vmem:[#allocation6 + $0xf0] sm:$0xff]
    %v179 = vld [vmem:[#allocation6 + $0xf8] sm:$0xff]
    %v180 = vld [vmem:[#allocation6 + $0x100] sm:$0xff]
    %v181 = vld [vmem:[#allocation6 + $0x108] sm:$0xff]
    %v182 = vld [vmem:[#allocation6 + $0x110] sm:$0xff]
    %v183 = vld [vmem:[#allocation6 + $0x118] sm:$0xff]
    %v184 = vld [vmem:[#allocation6 + $0x120] sm:$0xff]
    %v185 = vld [vmem:[#allocation6 + $0x128] sm:$0xff]
    %v186 = vld [vmem:[#allocation6 + $0x130] sm:$0xff]
    %v187 = vld [vmem:[#allocation6 + $0x138] sm:$0xff]
    %v188 = vld [vmem:[#allocation6 + $0x140] sm:$0xff]
    %v189 = vld [vmem:[#allocation6 + $0x148] sm:$0xff]
    %v190 = vld [vmem:[#allocation6 + $0x150] sm:$0xff]
    %v191 = vld [vmem:[#allocation6 + $0x158] sm:$0xff]
    %v192 = vld [vmem:[#allocation6 + $0x160] sm:$0xff]
    %v193 = vld [vmem:[#allocation6 + $0x168] sm:$0xff]
    %v194 = vld [vmem:[#allocation6 + $0x170] sm:$0xff]
    %v195 = vld [vmem:[#allocation6 + $0x178] sm:$0xff]
    %v196 = vld [vmem:[#allocation6 + $0x180] sm:$0xff]
    %v197 = vld [vmem:[#allocation6 + $0x188] sm:$0xff]
    %v198 = vld [vmem:[#allocation6 + $0x190] sm:$0xff]
    %v199 = vld [vmem:[#allocation6 + $0x198] sm:$0xff]
    %v200 = vld [vmem:[#allocation6 + $0x1a0] sm:$0xff]
    %v201 = vld [vmem:[#allocation6 + $0x1a8] sm:$0xff]
    %v202 = vld [vmem:[#allocation6 + $0x1b0] sm:$0xff]
    %v203 = vld [vmem:[#allocation6 + $0x1b8] sm:$0xff]
    %v204 = vld [vmem:[#allocation6 + $0x1c0] sm:$0xff]
    %v205 = vld [vmem:[#allocation6 + $0x1c8] sm:$0xff]
    %v206 = vld [vmem:[#allocation6 + $0x1d0] sm:$0xff]
    %v207 = vld [vmem:[#allocation6 + $0x1d8] sm:$0xff]
    %v208 = vld [vmem:[#allocation6 + $0x1e0] sm:$0xff]
    %v209 = vld [vmem:[#allocation6 + $0x1e8] sm:$0xff]
    %v210 = vld [vmem:[#allocation6 + $0x1f0] sm:$0xff]
    %v211 = vld [vmem:[#allocation6 + $0x1f8] sm:$0xff]
    %v212 = vld [vmem:[#allocation6 + $0x200] sm:$0xff]
    %v213 = vld [vmem:[#allocation6 + $0x208] sm:$0xff]
    %v214 = vld [vmem:[#allocation6 + $0x210] sm:$0xff]
    %v215 = vld [vmem:[#allocation6 + $0x218] sm:$0xff]
    %v216 = vld [vmem:[#allocation6 + $0x220] sm:$0xff]
    %v217 = vld [vmem:[#allocation6 + $0x228] sm:$0xff]
    %v218 = vld [vmem:[#allocation6 + $0x230] sm:$0xff]
    %v219 = vld [vmem:[#allocation6 + $0x238] sm:$0xff]
    %v220 = vld [vmem:[#allocation6 + $0x240] sm:$0xff]
    %v221 = vld [vmem:[#allocation6 + $0x248] sm:$0xff]
    %v222 = vld [vmem:[#allocation6 + $0x250] sm:$0xff]
    %v223 = vld [vmem:[#allocation6 + $0x258] sm:$0xff]
    %v224 = vld [vmem:[#allocation6 + $0x260] sm:$0xff]
    %v225 = vld [vmem:[#allocation6 + $0x268] sm:$0xff]
    %v226 = vld [vmem:[#allocation6 + $0x270] sm:$0xff]
    %v227 = vld [vmem:[#allocation6 + $0x278] sm:$0xff]
    %v228 = vld [vmem:[#allocation6 + $0x280] sm:$0xff]
    %v229 = vld [vmem:[#allocation6 + $0x288] sm:$0xff]
    %v230 = vld [vmem:[#allocation6 + $0x290] sm:$0xff]
    %v231 = vld [vmem:[#allocation6 + $0x298] sm:$0xff]
    %v232 = vld [vmem:[#allocation6 + $0x2a0] sm:$0xff]
    %v233 = vld [vmem:[#allocation6 + $0x2a8] sm:$0xff]
    %v234 = vld [vmem:[#allocation6 + $0x2b0] sm:$0xff]
    %v235 = vld [vmem:[#allocation6 + $0x2b8] sm:$0xff]
    %v236 = vld [vmem:[#allocation6 + $0x2c0] sm:$0xff]
    %v237 = vld [vmem:[#allocation6 + $0x2c8] sm:$0xff]
    %v238 = vld [vmem:[#allocation6 + $0x2d0] sm:$0xff]
    %v239 = vld [vmem:[#allocation6 + $0x2d8] sm:$0xff]
    %v240 = vld [vmem:[#allocation6 + $0x2e0] sm:$0xff]
    %v241 = vld [vmem:[#allocation6 + $0x2e8] sm:$0xff]
    %v242 = vld [vmem:[#allocation6 + $0x2f0] sm:$0xff]
    %v243 = vld [vmem:[#allocation6 + $0x2f8] sm:$0xff]
    %v244 = vunpack.c.l.s8.bf16 %v148
    %v245 = vunpack.c.l.s8.bf16 %v149
    %v246 = vunpack.c.l.s8.bf16 %v150
    %v247 = vunpack.c.l.s8.bf16 %v151
    %v248 = vunpack.c.l.s8.bf16 %v152
    %v249 = vunpack.c.l.s8.bf16 %v153
    %v250 = vunpack.c.l.s8.bf16 %v154
    %v251 = vunpack.c.l.s8.bf16 %v155
    %v252 = vunpack.c.h.s8.bf16 %v148
    %v253 = vunpack.c.h.s8.bf16 %v149
    %v254 = vunpack.c.h.s8.bf16 %v150
    %v255 = vunpack.c.h.s8.bf16 %v151
    %v256 = vunpack.c.h.s8.bf16 %v152
    %v257 = vunpack.c.h.s8.bf16 %v153
    %v258 = vunpack.c.h.s8.bf16 %v154
    %v259 = vunpack.c.h.s8.bf16 %v155
    %v260 = vunpack.c.l.s8.bf16 %v156
    %v261 = vunpack.c.l.s8.bf16 %v157
    %v262 = vunpack.c.l.s8.bf16 %v158
    %v263 = vunpack.c.l.s8.bf16 %v159
    %v264 = vunpack.c.l.s8.bf16 %v160
    %v265 = vunpack.c.l.s8.bf16 %v161
    %v266 = vunpack.c.l.s8.bf16 %v162
    %v267 = vunpack.c.l.s8.bf16 %v163
    %v268 = vunpack.c.h.s8.bf16 %v156
    %v269 = vunpack.c.h.s8.bf16 %v157
    %v270 = vunpack.c.h.s8.bf16 %v158
    %v271 = vunpack.c.h.s8.bf16 %v159
    %v272 = vunpack.c.h.s8.bf16 %v160
    %v273 = vunpack.c.h.s8.bf16 %v161
    %v274 = vunpack.c.h.s8.bf16 %v162
    %v275 = vunpack.c.h.s8.bf16 %v163
    %v276 = vunpack.c.l.s8.bf16 %v164
    %v277 = vunpack.c.l.s8.bf16 %v165
    %v278 = vunpack.c.l.s8.bf16 %v166
    %v279 = vunpack.c.l.s8.bf16 %v167
    %v280 = vunpack.c.l.s8.bf16 %v168
    %v281 = vunpack.c.l.s8.bf16 %v169
    %v282 = vunpack.c.l.s8.bf16 %v170
    %v283 = vunpack.c.l.s8.bf16 %v171
    %v284 = vunpack.c.h.s8.bf16 %v164
    %v285 = vunpack.c.h.s8.bf16 %v165
    %v286 = vunpack.c.h.s8.bf16 %v166
    %v287 = vunpack.c.h.s8.bf16 %v167
    %v288 = vunpack.c.h.s8.bf16 %v168
    %v289 = vunpack.c.h.s8.bf16 %v169
    %v290 = vunpack.c.h.s8.bf16 %v170
    %v291 = vunpack.c.h.s8.bf16 %v171
    %v292 = vunpack.c.l.s8.bf16 %v172
    %v293 = vunpack.c.l.s8.bf16 %v173
    %v294 = vunpack.c.l.s8.bf16 %v174
    %v295 = vunpack.c.l.s8.bf16 %v175
    %v296 = vunpack.c.l.s8.bf16 %v176
    %v297 = vunpack.c.l.s8.bf16 %v177
    %v298 = vunpack.c.l.s8.bf16 %v178
    %v299 = vunpack.c.l.s8.bf16 %v179
    %v300 = vunpack.c.h.s8.bf16 %v172
    %v301 = vunpack.c.h.s8.bf16 %v173
    %v302 = vunpack.c.h.s8.bf16 %v174
    %v303 = vunpack.c.h.s8.bf16 %v175
    %v304 = vunpack.c.h.s8.bf16 %v176
    %v305 = vunpack.c.h.s8.bf16 %v177
    %v306 = vunpack.c.h.s8.bf16 %v178
    %v307 = vunpack.c.h.s8.bf16 %v179
    %v308 = vunpack.c.l.s8.bf16 %v180
    %v309 = vunpack.c.l.s8.bf16 %v181
    %v310 = vunpack.c.l.s8.bf16 %v182
    %v311 = vunpack.c.l.s8.bf16 %v183
    %v312 = vunpack.c.l.s8.bf16 %v184
    %v313 = vunpack.c.l.s8.bf16 %v185
    %v314 = vunpack.c.l.s8.bf16 %v186
    %v315 = vunpack.c.l.s8.bf16 %v187
    %v316 = vunpack.c.h.s8.bf16 %v180
    %v317 = vunpack.c.h.s8.bf16 %v181
    %v318 = vunpack.c.h.s8.bf16 %v182
    %v319 = vunpack.c.h.s8.bf16 %v183
    %v320 = vunpack.c.h.s8.bf16 %v184
    %v321 = vunpack.c.h.s8.bf16 %v185
    %v322 = vunpack.c.h.s8.bf16 %v186
    %v323 = vunpack.c.h.s8.bf16 %v187
    %v324 = vunpack.c.l.s8.bf16 %v188
    %v325 = vunpack.c.l.s8.bf16 %v189
    %v326 = vunpack.c.l.s8.bf16 %v190
    %v327 = vunpack.c.l.s8.bf16 %v191
    %v328 = vunpack.c.l.s8.bf16 %v192
    %v329 = vunpack.c.l.s8.bf16 %v193
    %v330 = vunpack.c.l.s8.bf16 %v194
    %v331 = vunpack.c.l.s8.bf16 %v195
    %v332 = vunpack.c.h.s8.bf16 %v188
    %v333 = vunpack.c.h.s8.bf16 %v189
    %v334 = vunpack.c.h.s8.bf16 %v190
    %v335 = vunpack.c.h.s8.bf16 %v191
    %v336 = vunpack.c.h.s8.bf16 %v192
    %v337 = vunpack.c.h.s8.bf16 %v193
    %v338 = vunpack.c.h.s8.bf16 %v194
    %v339 = vunpack.c.h.s8.bf16 %v195
    %v340 = vunpack.c.l.s8.bf16 %v196
    %v341 = vunpack.c.l.s8.bf16 %v197
    %v342 = vunpack.c.l.s8.bf16 %v198
    %v343 = vunpack.c.l.s8.bf16 %v199
    %v344 = vunpack.c.l.s8.bf16 %v200
    %v345 = vunpack.c.l.s8.bf16 %v201
    %v346 = vunpack.c.l.s8.bf16 %v202
    %v347 = vunpack.c.l.s8.bf16 %v203
    %v348 = vunpack.c.h.s8.bf16 %v196
    %v349 = vunpack.c.h.s8.bf16 %v197
    %v350 = vunpack.c.h.s8.bf16 %v198
    %v351 = vunpack.c.h.s8.bf16 %v199
    %v352 = vunpack.c.h.s8.bf16 %v200
    %v353 = vunpack.c.h.s8.bf16 %v201
    %v354 = vunpack.c.h.s8.bf16 %v202
    %v355 = vunpack.c.h.s8.bf16 %v203
    %v356 = vunpack.c.l.s8.bf16 %v204
    %v357 = vunpack.c.l.s8.bf16 %v205
    %v358 = vunpack.c.l.s8.bf16 %v206
    %v359 = vunpack.c.l.s8.bf16 %v207
    %v360 = vunpack.c.l.s8.bf16 %v208
    %v361 = vunpack.c.l.s8.bf16 %v209
    %v362 = vunpack.c.l.s8.bf16 %v210
    %v363 = vunpack.c.l.s8.bf16 %v211
    %v364 = vunpack.c.h.s8.bf16 %v204
    %v365 = vunpack.c.h.s8.bf16 %v205
    %v366 = vunpack.c.h.s8.bf16 %v206
    %v367 = vunpack.c.h.s8.bf16 %v207
    %v368 = vunpack.c.h.s8.bf16 %v208
    %v369 = vunpack.c.h.s8.bf16 %v209
    %v370 = vunpack.c.h.s8.bf16 %v210
    %v371 = vunpack.c.h.s8.bf16 %v211
    %v372 = vunpack.c.l.s8.bf16 %v212
    %v373 = vunpack.c.l.s8.bf16 %v213
    %v374 = vunpack.c.l.s8.bf16 %v214
    %v375 = vunpack.c.l.s8.bf16 %v215
    %v376 = vunpack.c.l.s8.bf16 %v216
    %v377 = vunpack.c.l.s8.bf16 %v217
    %v378 = vunpack.c.l.s8.bf16 %v218
    %v379 = vunpack.c.l.s8.bf16 %v219
    %v380 = vunpack.c.h.s8.bf16 %v212
    %v381 = vunpack.c.h.s8.bf16 %v213
    %v382 = vunpack.c.h.s8.bf16 %v214
    %v383 = vunpack.c.h.s8.bf16 %v215
    %v384 = vunpack.c.h.s8.bf16 %v216
    %v385 = vunpack.c.h.s8.bf16 %v217
    %v386 = vunpack.c.h.s8.bf16 %v218
    %v387 = vunpack.c.h.s8.bf16 %v219
    %v388 = vunpack.c.l.s8.bf16 %v220
    %v389 = vunpack.c.l.s8.bf16 %v221
    %v390 = vunpack.c.l.s8.bf16 %v222
    %v391 = vunpack.c.l.s8.bf16 %v223
    %v392 = vunpack.c.l.s8.bf16 %v224
    %v393 = vunpack.c.l.s8.bf16 %v225
    %v394 = vunpack.c.l.s8.bf16 %v226
    %v395 = vunpack.c.l.s8.bf16 %v227
    %v396 = vunpack.c.h.s8.bf16 %v220
    %v397 = vunpack.c.h.s8.bf16 %v221
    %v398 = vunpack.c.h.s8.bf16 %v222
    %v399 = vunpack.c.h.s8.bf16 %v223
    %v400 = vunpack.c.h.s8.bf16 %v224
    %v401 = vunpack.c.h.s8.bf16 %v225
    %v402 = vunpack.c.h.s8.bf16 %v226
    %v403 = vunpack.c.h.s8.bf16 %v227
    %v404 = vunpack.c.l.s8.bf16 %v228
    %v405 = vunpack.c.l.s8.bf16 %v229
    %v406 = vunpack.c.l.s8.bf16 %v230
    %v407 = vunpack.c.l.s8.bf16 %v231
    %v408 = vunpack.c.l.s8.bf16 %v232
    %v409 = vunpack.c.l.s8.bf16 %v233
    %v410 = vunpack.c.l.s8.bf16 %v234
    %v411 = vunpack.c.l.s8.bf16 %v235
    %v412 = vunpack.c.h.s8.bf16 %v228
    %v413 = vunpack.c.h.s8.bf16 %v229
    %v414 = vunpack.c.h.s8.bf16 %v230
    %v415 = vunpack.c.h.s8.bf16 %v231
    %v416 = vunpack.c.h.s8.bf16 %v232
    %v417 = vunpack.c.h.s8.bf16 %v233
    %v418 = vunpack.c.h.s8.bf16 %v234
    %v419 = vunpack.c.h.s8.bf16 %v235
    %v420 = vunpack.c.l.s8.bf16 %v236
    %v421 = vunpack.c.l.s8.bf16 %v237
    %v422 = vunpack.c.l.s8.bf16 %v238
    %v423 = vunpack.c.l.s8.bf16 %v239
    %v424 = vunpack.c.l.s8.bf16 %v240
    %v425 = vunpack.c.l.s8.bf16 %v241
    %v426 = vunpack.c.l.s8.bf16 %v242
    %v427 = vunpack.c.l.s8.bf16 %v243
    %v428 = vunpack.c.h.s8.bf16 %v236
    %v429 = vunpack.c.h.s8.bf16 %v237
    %v430 = vunpack.c.h.s8.bf16 %v238
    %v431 = vunpack.c.h.s8.bf16 %v239
    %v432 = vunpack.c.h.s8.bf16 %v240
    %v433 = vunpack.c.h.s8.bf16 %v241
    %v434 = vunpack.c.h.s8.bf16 %v242
    %v435 = vunpack.c.h.s8.bf16 %v243
    %v438 = vunpack.c.l.s4 1966171168
    %v439 = vunpack.c.0.s8 %v438
    %v440 = vlaneseq
    %v441 = vshrl.u32 %v440, 7
    %v442 = vsub.s32 %v439, %v441
    %v443 = vrot.slane %v147, %v442
    %v444 = vcombine.high %v443, %v443
    %v446 = vunpack.c.l.s4 1966171168
    %v447 = vunpack.c.0.s8 %v446
    %v448 = vlaneseq
    %v449 = vshrl.u32 %v448, 7
    %v450 = vsub.s32 %v447, %v449
    %v451 = vrot.slane %v443, %v450
    %v453 = vunpack.c.l.s4 1966171168
    %v454 = vunpack.c.0.s8 %v453
    %v455 = vlaneseq
    %v456 = vshrl.u32 %v455, 7
    %v457 = vsub.s32 %v454, %v456
    %v458 = vrot.slane %v444, %v457
    %v459 = vcombine.high %v451, %v451
    %463 = vmatprep.subr.bf16.mxu0 %v245
    %464 = vmatpush1.bf16.msra.mxu0 %v244
    %465 = vmatprep.subr.bf16.mxu0 %v253
    %466 = vmatpush1.bf16.msra.mxu0 %v252
    %467 = vmatprep.subr.bf16.mxu0 %v261
    %468 = vmatpush1.bf16.msra.mxu0 %v260
    %469 = vmatprep.subr.bf16.mxu0 %v269
    %470 = vmatpush1.bf16.msra.mxu0 %v268
    %471 = vmatprep.subr.bf16.mxu0 %v277
    %472 = vmatpush1.bf16.msra.mxu0 %v276
    %473 = vmatprep.subr.bf16.mxu0 %v285
    %474 = vmatpush1.bf16.msra.mxu0 %v284
    %475 = vmatprep.subr.bf16.mxu0 %v293
    %476 = vmatpush1.bf16.msra.mxu0 %v292
    %477 = vmatprep.subr.bf16.mxu0 %v301
    %478 = vmatpush1.bf16.msra.mxu0 %v300
    %479 = vmatprep.subr.bf16.mxu0 %v309
    %480 = vmatpush1.bf16.msra.mxu0 %v308
    %481 = vmatprep.subr.bf16.mxu0 %v317
    %482 = vmatpush1.bf16.msra.mxu0 %v316
    %483 = vmatprep.subr.bf16.mxu0 %v325
    %484 = vmatpush1.bf16.msra.mxu0 %v324
    %485 = vmatprep.subr.bf16.mxu0 %v333
    %486 = vmatpush1.bf16.msra.mxu0 %v332
    %487 = vmatprep.subr.bf16.mxu0 %v341
    %488 = vmatpush1.bf16.msra.mxu0 %v340
    %489 = vmatprep.subr.bf16.mxu0 %v349
    %490 = vmatpush1.bf16.msra.mxu0 %v348
    %491 = vmatprep.subr.bf16.mxu0 %v357
    %492 = vmatpush1.bf16.msra.mxu0 %v356
    %493 = vmatprep.subr.bf16.mxu0 %v365
    %494 = vmatpush1.bf16.msra.mxu0 %v364
    %495 = vmatprep.mubr.bf16.mxu0 %v458
    %496 = vmatmul.mubr.bf16.gmra.mrb[0].mxu0 %v451
    %v497 = vpop.f32.mrb[0].mxu0
    %v498 = vadd.f32 0.0, %v497
    %v499 = vpop.f32.mrb[0].mxu0
    %v500 = vadd.f32 0.0, %v499
    %v501 = vpop.f32.mrb[0].mxu0
    %v502 = vpop.f32.mrb[0].mxu0
    %503 = vdwg.mxu0
    %504 = vmatprep.subr.bf16.mxu0 %v373
    %505 = vmatpush1.bf16.msra.mxu0 %v372
    %506 = vmatprep.subr.bf16.mxu0 %v381
    %507 = vmatpush1.bf16.msra.mxu0 %v380
    %508 = vmatprep.subr.bf16.mxu0 %v389
    %509 = vmatpush1.bf16.msra.mxu0 %v388
    %510 = vmatprep.subr.bf16.mxu0 %v397
    %511 = vmatpush1.bf16.msra.mxu0 %v396
    %512 = vmatprep.subr.bf16.mxu0 %v405
    %513 = vmatpush1.bf16.msra.mxu0 %v404
    %514 = vmatprep.subr.bf16.mxu0 %v413
    %515 = vmatpush1.bf16.msra.mxu0 %v412
    %516 = vmatprep.subr.bf16.mxu0 %v421
    %517 = vmatpush1.bf16.msra.mxu0 %v420
    %518 = vmatprep.subr.bf16.mxu0 %v429
    %519 = vmatpush1.bf16.msra.mxu0 %v428
    %520 = vmatprep.subr.bf16.mxu0 0
    %521 = vmatpush1.bf16.msra.mxu0 0
    %522 = vmatprep.subr.bf16.mxu0 0
    %523 = vmatpush1.bf16.msra.mxu0 0
    %524 = vmatprep.subr.bf16.mxu0 0
    %525 = vmatpush1.bf16.msra.mxu0 0
    %526 = vmatprep.subr.bf16.mxu0 0
    %527 = vmatpush1.bf16.msra.mxu0 0
    %528 = vmatprep.subr.bf16.mxu0 0
    %529 = vmatpush1.bf16.msra.mxu0 0
    %530 = vmatprep.subr.bf16.mxu0 0
    %531 = vmatpush1.bf16.msra.mxu0 0
    %532 = vmatprep.subr.bf16.mxu0 0
    %533 = vmatpush1.bf16.msra.mxu0 0
    %534 = vmatprep.subr.bf16.mxu0 0
    %535 = vmatpush1.bf16.msra.mxu0 0
    %536 = vmatprep.mubr.bf16.mxu0 0
    %537 = vmatmul.mubr.bf16.gmra.mrb[0].mxu0 %v459
    %v538 = vpop.f32.mrb[0].mxu0
    %v539 = vadd.f32 %v498, %v538
    %v540 = vpop.f32.mrb[0].mxu0
    %v541 = vadd.f32 %v500, %v540
    %v542 = vpop.f32.mrb[0].mxu0
    %v543 = vpop.f32.mrb[0].mxu0
    %544 = vdwg.mxu0
    %545 = vmatprep.subr.bf16.mxu0 %v247
    %546 = vmatpush1.bf16.msra.mxu0 %v246
    %547 = vmatprep.subr.bf16.mxu0 %v255
    %548 = vmatpush1.bf16.msra.mxu0 %v254
    %549 = vmatprep.subr.bf16.mxu0 %v263
    %550 = vmatpush1.bf16.msra.mxu0 %v262
    %551 = vmatprep.subr.bf16.mxu0 %v271
    %552 = vmatpush1.bf16.msra.mxu0 %v270
    %553 = vmatprep.subr.bf16.mxu0 %v279
    %554 = vmatpush1.bf16.msra.mxu0 %v278
    %555 = vmatprep.subr.bf16.mxu0 %v287
    %556 = vmatpush1.bf16.msra.mxu0 %v286
    %557 = vmatprep.subr.bf16.mxu0 %v295
    %558 = vmatpush1.bf16.msra.mxu0 %v294
    %559 = vmatprep.subr.bf16.mxu0 %v303
    %560 = vmatpush1.bf16.msra.mxu0 %v302
    %561 = vmatprep.subr.bf16.mxu0 %v311
    %562 = vmatpush1.bf16.msra.mxu0 %v310
    %563 = vmatprep.subr.bf16.mxu0 %v319
    %564 = vmatpush1.bf16.msra.mxu0 %v318
    %565 = vmatprep.subr.bf16.mxu0 %v327
    %566 = vmatpush1.bf16.msra.mxu0 %v326
    %567 = vmatprep.subr.bf16.mxu0 %v335
    %568 = vmatpush1.bf16.msra.mxu0 %v334
    %569 = vmatprep.subr.bf16.mxu0 %v343
    %570 = vmatpush1.bf16.msra.mxu0 %v342
    %571 = vmatprep.subr.bf16.mxu0 %v351
    %572 = vmatpush1.bf16.msra.mxu0 %v350
    %573 = vmatprep.subr.bf16.mxu0 %v359
    %574 = vmatpush1.bf16.msra.mxu0 %v358
    %575 = vmatprep.subr.bf16.mxu0 %v367
    %576 = vmatpush1.bf16.msra.mxu0 %v366
    %577 = vmatprep.mubr.bf16.mxu0 %v458
    %578 = vmatmul.mubr.bf16.gmra.mrb[0].mxu0 %v451
    %v579 = vpop.f32.mrb[0].mxu0
    %v580 = vadd.f32 0.0, %v579
    %v581 = vpop.f32.mrb[0].mxu0
    %v582 = vadd.f32 0.0, %v581
    %v583 = vpop.f32.mrb[0].mxu0
    %v584 = vpop.f32.mrb[0].mxu0
    %585 = vdwg.mxu0
    %586 = vmatprep.subr.bf16.mxu0 %v375
    %587 = vmatpush1.bf16.msra.mxu0 %v374
    %588 = vmatprep.subr.bf16.mxu0 %v383
    %589 = vmatpush1.bf16.msra.mxu0 %v382
    %590 = vmatprep.subr.bf16.mxu0 %v391
    %591 = vmatpush1.bf16.msra.mxu0 %v390
    %592 = vmatprep.subr.bf16.mxu0 %v399
    %593 = vmatpush1.bf16.msra.mxu0 %v398
    %594 = vmatprep.subr.bf16.mxu0 %v407
    %595 = vmatpush1.bf16.msra.mxu0 %v406
    %596 = vmatprep.subr.bf16.mxu0 %v415
    %597 = vmatpush1.bf16.msra.mxu0 %v414
    %598 = vmatprep.subr.bf16.mxu0 %v423
    %599 = vmatpush1.bf16.msra.mxu0 %v422
    %600 = vmatprep.subr.bf16.mxu0 %v431
    %601 = vmatpush1.bf16.msra.mxu0 %v430
    %602 = vmatprep.subr.bf16.mxu0 0
    %603 = vmatpush1.bf16.msra.mxu0 0
    %604 = vmatprep.subr.bf16.mxu0 0
    %605 = vmatpush1.bf16.msra.mxu0 0
    %606 = vmatprep.subr.bf16.mxu0 0
    %607 = vmatpush1.bf16.msra.mxu0 0
    %608 = vmatprep.subr.bf16.mxu0 0
    %609 = vmatpush1.bf16.msra.mxu0 0
    %610 = vmatprep.subr.bf16.mxu0 0
    %611 = vmatpush1.bf16.msra.mxu0 0
    %612 = vmatprep.subr.bf16.mxu0 0
    %613 = vmatpush1.bf16.msra.mxu0 0
    %614 = vmatprep.subr.bf16.mxu0 0
    %615 = vmatpush1.bf16.msra.mxu0 0
    %616 = vmatprep.subr.bf16.mxu0 0
    %617 = vmatpush1.bf16.msra.mxu0 0
    %618 = vmatprep.mubr.bf16.mxu0 0
    %619 = vmatmul.mubr.bf16.gmra.mrb[0].mxu0 %v459
    %v620 = vpop.f32.mrb[0].mxu0
    %v621 = vadd.f32 %v580, %v620
    %v622 = vpop.f32.mrb[0].mxu0
    %v623 = vadd.f32 %v582, %v622
    %v624 = vpop.f32.mrb[0].mxu0
    %v625 = vpop.f32.mrb[0].mxu0
    %626 = vdwg.mxu0
    %627 = vmatprep.subr.bf16.mxu0 %v249
    %628 = vmatpush1.bf16.msra.mxu0 %v248
    %629 = vmatprep.subr.bf16.mxu0 %v257
    %630 = vmatpush1.bf16.msra.mxu0 %v256
    %631 = vmatprep.subr.bf16.mxu0 %v265
    %632 = vmatpush1.bf16.msra.mxu0 %v264
    %633 = vmatprep.subr.bf16.mxu0 %v273
    %634 = vmatpush1.bf16.msra.mxu0 %v272
    %635 = vmatprep.subr.bf16.mxu0 %v281
    %636 = vmatpush1.bf16.msra.mxu0 %v280
    %637 = vmatprep.subr.bf16.mxu0 %v289
    %638 = vmatpush1.bf16.msra.mxu0 %v288
    %639 = vmatprep.subr.bf16.mxu0 %v297
    %640 = vmatpush1.bf16.msra.mxu0 %v296
    %641 = vmatprep.subr.bf16.mxu0 %v305
    %642 = vmatpush1.bf16.msra.mxu0 %v304
    %643 = vmatprep.subr.bf16.mxu0 %v313
    %644 = vmatpush1.bf16.msra.mxu0 %v312
    %645 = vmatprep.subr.bf16.mxu0 %v321
    %646 = vmatpush1.bf16.msra.mxu0 %v320
    %647 = vmatprep.subr.bf16.mxu0 %v329
    %648 = vmatpush1.bf16.msra.mxu0 %v328
    %649 = vmatprep.subr.bf16.mxu0 %v337
    %650 = vmatpush1.bf16.msra.mxu0 %v336
    %651 = vmatprep.subr.bf16.mxu0 %v345
    %652 = vmatpush1.bf16.msra.mxu0 %v344
    %653 = vmatprep.subr.bf16.mxu0 %v353
    %654 = vmatpush1.bf16.msra.mxu0 %v352
    %655 = vmatprep.subr.bf16.mxu0 %v361
    %656 = vmatpush1.bf16.msra.mxu0 %v360
    %657 = vmatprep.subr.bf16.mxu0 %v369
    %658 = vmatpush1.bf16.msra.mxu0 %v368
    %659 = vmatprep.mubr.bf16.mxu0 %v458
    %660 = vmatmul.mubr.bf16.gmra.mrb[0].mxu0 %v451
    %v661 = vpop.f32.mrb[0].mxu0
    %v662 = vadd.f32 0.0, %v661
    %v663 = vpop.f32.mrb[0].mxu0
    %v664 = vadd.f32 0.0, %v663
    %v665 = vpop.f32.mrb[0].mxu0
    %v666 = vpop.f32.mrb[0].mxu0
    %667 = vdwg.mxu0
    %668 = vmatprep.subr.bf16.mxu0 %v377
    %669 = vmatpush1.bf16.msra.mxu0 %v376
    %670 = vmatprep.subr.bf16.mxu0 %v385
    %671 = vmatpush1.bf16.msra.mxu0 %v384
    %672 = vmatprep.subr.bf16.mxu0 %v393
    %673 = vmatpush1.bf16.msra.mxu0 %v392
    %674 = vmatprep.subr.bf16.mxu0 %v401
    %675 = vmatpush1.bf16.msra.mxu0 %v400
    %676 = vmatprep.subr.bf16.mxu0 %v409
    %677 = vmatpush1.bf16.msra.mxu0 %v408
    %678 = vmatprep.subr.bf16.mxu0 %v417
    %679 = vmatpush1.bf16.msra.mxu0 %v416
    %680 = vmatprep.subr.bf16.mxu0 %v425
    %681 = vmatpush1.bf16.msra.mxu0 %v424
    %682 = vmatprep.subr.bf16.mxu0 %v433
    %683 = vmatpush1.bf16.msra.mxu0 %v432
    %684 = vmatprep.subr.bf16.mxu0 0
    %685 = vmatpush1.bf16.msra.mxu0 0
    %686 = vmatprep.subr.bf16.mxu0 0
    %687 = vmatpush1.bf16.msra.mxu0 0
    %688 = vmatprep.subr.bf16.mxu0 0
    %689 = vmatpush1.bf16.msra.mxu0 0
    %690 = vmatprep.subr.bf16.mxu0 0
    %691 = vmatpush1.bf16.msra.mxu0 0
    %692 = vmatprep.subr.bf16.mxu0 0
    %693 = vmatpush1.bf16.msra.mxu0 0
    %694 = vmatprep.subr.bf16.mxu0 0
    %695 = vmatpush1.bf16.msra.mxu0 0
    %696 = vmatprep.subr.bf16.mxu0 0
    %697 = vmatpush1.bf16.msra.mxu0 0
    %698 = vmatprep.subr.bf16.mxu0 0
    %699 = vmatpush1.bf16.msra.mxu0 0
    %700 = vmatprep.mubr.bf16.mxu0 0
    %701 = vmatmul.mubr.bf16.gmra.mrb[0].mxu0 %v459
    %v702 = vpop.f32.mrb[0].mxu0
    %v703 = vadd.f32 %v662, %v702
    %v704 = vpop.f32.mrb[0].mxu0
    %v705 = vadd.f32 %v664, %v704
    %v706 = vpop.f32.mrb[0].mxu0
    %v707 = vpop.f32.mrb[0].mxu0
    %708 = vdwg.mxu0
    %709 = vmatprep.subr.bf16.mxu0 %v251
    %710 = vmatpush1.bf16.msra.mxu0 %v250
    %711 = vmatprep.subr.bf16.mxu0 %v259
    %712 = vmatpush1.bf16.msra.mxu0 %v258
    %713 = vmatprep.subr.bf16.mxu0 %v267
    %714 = vmatpush1.bf16.msra.mxu0 %v266
    %715 = vmatprep.subr.bf16.mxu0 %v275
    %716 = vmatpush1.bf16.msra.mxu0 %v274
    %717 = vmatprep.subr.bf16.mxu0 %v283
    %718 = vmatpush1.bf16.msra.mxu0 %v282
    %719 = vmatprep.subr.bf16.mxu0 %v291
    %720 = vmatpush1.bf16.msra.mxu0 %v290
    %721 = vmatprep.subr.bf16.mxu0 %v299
    %722 = vmatpush1.bf16.msra.mxu0 %v298
    %723 = vmatprep.subr.bf16.mxu0 %v307
    %724 = vmatpush1.bf16.msra.mxu0 %v306
    %725 = vmatprep.subr.bf16.mxu0 %v315
    %726 = vmatpush1.bf16.msra.mxu0 %v314
    %727 = vmatprep.subr.bf16.mxu0 %v323
    %728 = vmatpush1.bf16.msra.mxu0 %v322
    %729 = vmatprep.subr.bf16.mxu0 %v331
    %730 = vmatpush1.bf16.msra.mxu0 %v330
    %731 = vmatprep.subr.bf16.mxu0 %v339
    %732 = vmatpush1.bf16.msra.mxu0 %v338
    %733 = vmatprep.subr.bf16.mxu0 %v347
    %734 = vmatpush1.bf16.msra.mxu0 %v346
    %735 = vmatprep.subr.bf16.mxu0 %v355
    %736 = vmatpush1.bf16.msra.mxu0 %v354
    %737 = vmatprep.subr.bf16.mxu0 %v363
    %738 = vmatpush1.bf16.msra.mxu0 %v362
    %739 = vmatprep.subr.bf16.mxu0 %v371
    %740 = vmatpush1.bf16.msra.mxu0 %v370
    %741 = vmatprep.mubr.bf16.mxu0 %v458
    %742 = vmatmul.mubr.bf16.gmra.mrb[0].mxu0 %v451
    %v743 = vpop.f32.mrb[0].mxu0
    %v744 = vadd.f32 0.0, %v743
    %v745 = vpop.f32.mrb[0].mxu0
    %v746 = vadd.f32 0.0, %v745
    %v747 = vpop.f32.mrb[0].mxu0
    %v748 = vpop.f32.mrb[0].mxu0
    %749 = vdwg.mxu0
    %750 = vmatprep.subr.bf16.mxu0 %v379
    %751 = vmatpush1.bf16.msra.mxu0 %v378
    %752 = vmatprep.subr.bf16.mxu0 %v387
    %753 = vmatpush1.bf16.msra.mxu0 %v386
    %754 = vmatprep.subr.bf16.mxu0 %v395
    %755 = vmatpush1.bf16.msra.mxu0 %v394
    %756 = vmatprep.subr.bf16.mxu0 %v403
    %757 = vmatpush1.bf16.msra.mxu0 %v402
    %758 = vmatprep.subr.bf16.mxu0 %v411
    %759 = vmatpush1.bf16.msra.mxu0 %v410
    %760 = vmatprep.subr.bf16.mxu0 %v419
    %761 = vmatpush1.bf16.msra.mxu0 %v418
    %762 = vmatprep.subr.bf16.mxu0 %v427
    %763 = vmatpush1.bf16.msra.mxu0 %v426
    %764 = vmatprep.subr.bf16.mxu0 %v435
    %765 = vmatpush1.bf16.msra.mxu0 %v434
    %766 = vmatprep.subr.bf16.mxu0 0
    %767 = vmatpush1.bf16.msra.mxu0 0
    %768 = vmatprep.subr.bf16.mxu0 0
    %769 = vmatpush1.bf16.msra.mxu0 0
    %770 = vmatprep.subr.bf16.mxu0 0
    %771 = vmatpush1.bf16.msra.mxu0 0
    %772 = vmatprep.subr.bf16.mxu0 0
    %773 = vmatpush1.bf16.msra.mxu0 0
    %774 = vmatprep.subr.bf16.mxu0 0
    %775 = vmatpush1.bf16.msra.mxu0 0
    %776 = vmatprep.subr.bf16.mxu0 0
    %777 = vmatpush1.bf16.msra.mxu0 0
    %778 = vmatprep.subr.bf16.mxu0 0
    %779 = vmatpush1.bf16.msra.mxu0 0
    %780 = vmatprep.subr.bf16.mxu0 0
    %781 = vmatpush1.bf16.msra.mxu0 0
    %782 = vmatprep.mubr.bf16.mxu0 0
    %783 = vmatmul.mubr.bf16.gmra.mrb[0].mxu0 %v459
    %v784 = vpop.f32.mrb[0].mxu0
    %v785 = vadd.f32 %v744, %v784
    %v786 = vpop.f32.mrb[0].mxu0
    %v787 = vadd.f32 %v746, %v786
    %v788 = vpop.f32.mrb[0].mxu0
    %v789 = vpop.f32.mrb[0].mxu0
    %790 = vdwg.mxu0
    %v791 = vld [vmem:[%s2] sm:$0xff]
    %v793 = vlaneseq
    %v794 = vshrl.u32 %v793, 7
    %v795 = vsub.s32 0, %v794
    %v796 = vrot.slane %v791, %v795
    %v797 = vlaneseq
    %v798 = vshrl.u32 %v797, 7
    %v799 = vsub.s32 1, %v798
    %v800 = vrot.slane %v791, %v799
    %v801 = vlaneseq
    %v802 = vshrl.u32 %v801, 7
    %v803 = vsub.s32 2, %v802
    %v804 = vrot.slane %v791, %v803
    %v805 = vlaneseq
    %v806 = vshrl.u32 %v805, 7
    %v807 = vsub.s32 3, %v806
    %v808 = vrot.slane %v791, %v807
    %v809 = vlaneseq
    %v810 = vshrl.u32 %v809, 7
    %v811 = vsub.s32 4, %v810
    %v812 = vrot.slane %v791, %v811
    %v813 = vlaneseq
    %v814 = vshrl.u32 %v813, 7
    %v815 = vsub.s32 5, %v814
    %v816 = vrot.slane %v791, %v815
    %v817 = vlaneseq
    %v818 = vshrl.u32 %v817, 7
    %v819 = vsub.s32 6, %v818
    %v820 = vrot.slane %v791, %v819
    %v821 = vlaneseq
    %v822 = vshrl.u32 %v821, 7
    %v823 = vsub.s32 7, %v822
    %v824 = vrot.slane %v791, %v823
    %v833 = vmul.f32 %v539, %v796
    %v834 = vmul.f32 %v541, %v800
    %v835 = vmul.f32 %v621, %v804
    %v836 = vmul.f32 %v623, %v808
    %v837 = vmul.f32 %v703, %v812
    %v838 = vmul.f32 %v705, %v816
    %v839 = vmul.f32 %v785, %v820
    %v840 = vmul.f32 %v787, %v824
    %v841 = vld [vmem:[#allocation8] sm:$0xff]
    %v843 = vlaneseq
    %v844 = vshrl.u32 %v843, 7
    %v845 = vsub.s32 0, %v844
    %v846 = vrot.slane %v841, %v845
    %v847 = vlaneseq
    %v848 = vshrl.u32 %v847, 7
    %v849 = vsub.s32 1, %v848
    %v850 = vrot.slane %v841, %v849
    %v851 = vlaneseq
    %v852 = vshrl.u32 %v851, 7
    %v853 = vsub.s32 2, %v852
    %v854 = vrot.slane %v841, %v853
    %v855 = vlaneseq
    %v856 = vshrl.u32 %v855, 7
    %v857 = vsub.s32 3, %v856
    %v858 = vrot.slane %v841, %v857
    %v859 = vlaneseq
    %v860 = vshrl.u32 %v859, 7
    %v861 = vsub.s32 4, %v860
    %v862 = vrot.slane %v841, %v861
    %v863 = vlaneseq
    %v864 = vshrl.u32 %v863, 7
    %v865 = vsub.s32 5, %v864
    %v866 = vrot.slane %v841, %v865
    %v867 = vlaneseq
    %v868 = vshrl.u32 %v867, 7
    %v869 = vsub.s32 6, %v868
    %v870 = vrot.slane %v841, %v869
    %v871 = vlaneseq
    %v872 = vshrl.u32 %v871, 7
    %v873 = vsub.s32 7, %v872
    %v874 = vrot.slane %v841, %v873
    %v883 = vadd.f32 %v833, %v846
    %v884 = vadd.f32 %v834, %v850
    %v885 = vadd.f32 %v835, %v854
    %v886 = vadd.f32 %v836, %v858
    %v887 = vadd.f32 %v837, %v862
    %v888 = vadd.f32 %v838, %v866
    %v889 = vadd.f32 %v839, %v870
    %v890 = vadd.f32 %v840, %v874
    %v891 = vmax.f32 %v883, 0.0
    %v892 = vmax.f32 %v884, 0.0
    %v893 = vmax.f32 %v885, 0.0
    %v894 = vmax.f32 %v886, 0.0
    %v895 = vmax.f32 %v887, 0.0
    %v896 = vmax.f32 %v888, 0.0
    %v897 = vmax.f32 %v889, 0.0
    %v898 = vmax.f32 %v890, 0.0
    %v899 = vpack.c.bf16 %v891, %v891
    %v900 = vpack.c.bf16 %v892, %v892
    %v901 = vpack.c.bf16 %v893, %v893
    %v902 = vpack.c.bf16 %v894, %v894
    %v903 = vpack.c.bf16 %v895, %v895
    %v904 = vpack.c.bf16 %v896, %v896
    %v905 = vpack.c.bf16 %v897, %v897
    %v906 = vpack.c.bf16 %v898, %v898
    %v907 = vld [vmem:[#allocation9] sm:$0xff]
    %v908 = vld [vmem:[#allocation9 + $0x8] sm:$0xff]
    %v909 = vld [vmem:[#allocation9 + $0x10] sm:$0xff]
    %v910 = vld [vmem:[#allocation9 + $0x18] sm:$0xff]
    %v911 = vld [vmem:[#allocation9 + $0x20] sm:$0xff]
    %v912 = vld [vmem:[#allocation9 + $0x28] sm:$0xff]
    %v913 = vld [vmem:[#allocation9 + $0x30] sm:$0xff]
    %v914 = vld [vmem:[#allocation9 + $0x38] sm:$0xff]
    %v915 = vld [vmem:[#allocation9 + $0x40] sm:$0xff]
    %v916 = vld [vmem:[#allocation9 + $0x48] sm:$0xff]
    %v917 = vld [vmem:[#allocation9 + $0x50] sm:$0xff]
    %v918 = vld [vmem:[#allocation9 + $0x58] sm:$0xff]
    %v919 = vld [vmem:[#allocation9 + $0x60] sm:$0xff]
    %v920 = vld [vmem:[#allocation9 + $0x68] sm:$0xff]
    %v921 = vld [vmem:[#allocation9 + $0x70] sm:$0xff]
    %v922 = vld [vmem:[#allocation9 + $0x78] sm:$0xff]
    %v923 = vld [vmem:[#allocation9 + $0x80] sm:$0xff]
    %v924 = vld [vmem:[#allocation9 + $0x88] sm:$0xff]
    %v925 = vld [vmem:[#allocation9 + $0x90] sm:$0xff]
    %v926 = vld [vmem:[#allocation9 + $0x98] sm:$0xff]
    %v927 = vld [vmem:[#allocation9 + $0xa0] sm:$0xff]
    %v928 = vld [vmem:[#allocation9 + $0xa8] sm:$0xff]
    %v929 = vld [vmem:[#allocation9 + $0xb0] sm:$0xff]
    %v930 = vld [vmem:[#allocation9 + $0xb8] sm:$0xff]
    %v931 = vld [vmem:[#allocation9 + $0xc0] sm:$0xff]
    %v932 = vld [vmem:[#allocation9 + $0xc8] sm:$0xff]
    %v933 = vld [vmem:[#allocation9 + $0xd0] sm:$0xff]
    %v934 = vld [vmem:[#allocation9 + $0xd8] sm:$0xff]
    %v935 = vld [vmem:[#allocation9 + $0xe0] sm:$0xff]
    %v936 = vld [vmem:[#allocation9 + $0xe8] sm:$0xff]
    %v937 = vld [vmem:[#allocation9 + $0xf0] sm:$0xff]
    %v938 = vld [vmem:[#allocation9 + $0xf8] sm:$0xff]
    %v939 = vld [vmem:[#allocation9 + $0x100] sm:$0xff]
    %v940 = vld [vmem:[#allocation9 + $0x108] sm:$0xff]
    %v941 = vld [vmem:[#allocation9 + $0x110] sm:$0xff]
    %v942 = vld [vmem:[#allocation9 + $0x118] sm:$0xff]
    %v943 = vld [vmem:[#allocation9 + $0x120] sm:$0xff]
    %v944 = vld [vmem:[#allocation9 + $0x128] sm:$0xff]
    %v945 = vld [vmem:[#allocation9 + $0x130] sm:$0xff]
    %v946 = vld [vmem:[#allocation9 + $0x138] sm:$0xff]
    %v947 = vld [vmem:[#allocation9 + $0x140] sm:$0xff]
    %v948 = vld [vmem:[#allocation9 + $0x148] sm:$0xff]
    %v949 = vld [vmem:[#allocation9 + $0x150] sm:$0xff]
    %v950 = vld [vmem:[#allocation9 + $0x158] sm:$0xff]
    %v951 = vld [vmem:[#allocation9 + $0x160] sm:$0xff]
    %v952 = vld [vmem:[#allocation9 + $0x168] sm:$0xff]
    %v953 = vld [vmem:[#allocation9 + $0x170] sm:$0xff]
    %v954 = vld [vmem:[#allocation9 + $0x178] sm:$0xff]
    %v955 = vld [vmem:[#allocation9 + $0x180] sm:$0xff]
    %v956 = vld [vmem:[#allocation9 + $0x188] sm:$0xff]
    %v957 = vld [vmem:[#allocation9 + $0x190] sm:$0xff]
    %v958 = vld [vmem:[#allocation9 + $0x198] sm:$0xff]
    %v959 = vld [vmem:[#allocation9 + $0x1a0] sm:$0xff]
    %v960 = vld [vmem:[#allocation9 + $0x1a8] sm:$0xff]
    %v961 = vld [vmem:[#allocation9 + $0x1b0] sm:$0xff]
    %v962 = vld [vmem:[#allocation9 + $0x1b8] sm:$0xff]
    %v963 = vld [vmem:[#allocation9 + $0x1c0] sm:$0xff]
    %v964 = vld [vmem:[#allocation9 + $0x1c8] sm:$0xff]
    %v965 = vld [vmem:[#allocation9 + $0x1d0] sm:$0xff]
    %v966 = vld [vmem:[#allocation9 + $0x1d8] sm:$0xff]
    %v967 = vld [vmem:[#allocation9 + $0x1e0] sm:$0xff]
    %v968 = vld [vmem:[#allocation9 + $0x1e8] sm:$0xff]
    %v969 = vld [vmem:[#allocation9 + $0x1f0] sm:$0xff]
    %v970 = vld [vmem:[#allocation9 + $0x1f8] sm:$0xff]
    %v971 = vld [vmem:[#allocation9 + $0x200] sm:$0xff]
    %v972 = vld [vmem:[#allocation9 + $0x208] sm:$0xff]
    %v973 = vld [vmem:[#allocation9 + $0x210] sm:$0xff]
    %v974 = vld [vmem:[#allocation9 + $0x218] sm:$0xff]
    %v975 = vld [vmem:[#allocation9 + $0x220] sm:$0xff]
    %v976 = vld [vmem:[#allocation9 + $0x228] sm:$0xff]
    %v977 = vld [vmem:[#allocation9 + $0x230] sm:$0xff]
    %v978 = vld [vmem:[#allocation9 + $0x238] sm:$0xff]
    %v979 = vld [vmem:[#allocation9 + $0x240] sm:$0xff]
    %v980 = vld [vmem:[#allocation9 + $0x248] sm:$0xff]
    %v981 = vld [vmem:[#allocation9 + $0x250] sm:$0xff]
    %v982 = vld [vmem:[#allocation9 + $0x258] sm:$0xff]
    %v983 = vld [vmem:[#allocation9 + $0x260] sm:$0xff]
    %v984 = vld [vmem:[#allocation9 + $0x268] sm:$0xff]
    %v985 = vld [vmem:[#allocation9 + $0x270] sm:$0xff]
    %v986 = vld [vmem:[#allocation9 + $0x278] sm:$0xff]
    %v987 = vld [vmem:[#allocation9 + $0x280] sm:$0xff]
    %v988 = vld [vmem:[#allocation9 + $0x288] sm:$0xff]
    %v989 = vld [vmem:[#allocation9 + $0x290] sm:$0xff]
    %v990 = vld [vmem:[#allocation9 + $0x298] sm:$0xff]
    %v991 = vld [vmem:[#allocation9 + $0x2a0] sm:$0xff]
    %v992 = vld [vmem:[#allocation9 + $0x2a8] sm:$0xff]
    %v993 = vld [vmem:[#allocation9 + $0x2b0] sm:$0xff]
    %v994 = vld [vmem:[#allocation9 + $0x2b8] sm:$0xff]
    %v995 = vld [vmem:[#allocation9 + $0x2c0] sm:$0xff]
    %v996 = vld [vmem:[#allocation9 + $0x2c8] sm:$0xff]
    %v997 = vld [vmem:[#allocation9 + $0x2d0] sm:$0xff]
    %v998 = vld [vmem:[#allocation9 + $0x2d8] sm:$0xff]
    %v999 = vld [vmem:[#allocation9 + $0x2e0] sm:$0xff]
    %v1000 = vld [vmem:[#allocation9 + $0x2e8] sm:$0xff]
    %v1001 = vld [vmem:[#allocation9 + $0x2f0] sm:$0xff]
    %v1002 = vld [vmem:[#allocation9 + $0x2f8] sm:$0xff]
    %v1003 = vld [vmem:[#allocation9 + $0x300] sm:$0xff]
    %v1004 = vld [vmem:[#allocation9 + $0x308] sm:$0xff]
    %v1005 = vld [vmem:[#allocation9 + $0x310] sm:$0xff]
    %v1006 = vld [vmem:[#allocation9 + $0x318] sm:$0xff]
    %v1007 = vld [vmem:[#allocation9 + $0x320] sm:$0xff]
    %v1008 = vld [vmem:[#allocation9 + $0x328] sm:$0xff]
    %v1009 = vld [vmem:[#allocation9 + $0x330] sm:$0xff]
    %v1010 = vld [vmem:[#allocation9 + $0x338] sm:$0xff]
    %v1011 = vld [vmem:[#allocation9 + $0x340] sm:$0xff]
    %v1012 = vld [vmem:[#allocation9 + $0x348] sm:$0xff]
    %v1013 = vld [vmem:[#allocation9 + $0x350] sm:$0xff]
    %v1014 = vld [vmem:[#allocation9 + $0x358] sm:$0xff]
    %v1015 = vld [vmem:[#allocation9 + $0x360] sm:$0xff]
    %v1016 = vld [vmem:[#allocation9 + $0x368] sm:$0xff]
    %v1017 = vld [vmem:[#allocation9 + $0x370] sm:$0xff]
    %v1018 = vld [vmem:[#allocation9 + $0x378] sm:$0xff]
    %v1019 = vld [vmem:[#allocation9 + $0x380] sm:$0xff]
    %v1020 = vld [vmem:[#allocation9 + $0x388] sm:$0xff]
    %v1021 = vld [vmem:[#allocation9 + $0x390] sm:$0xff]
    %v1022 = vld [vmem:[#allocation9 + $0x398] sm:$0xff]
    %v1023 = vld [vmem:[#allocation9 + $0x3a0] sm:$0xff]
    %v1024 = vld [vmem:[#allocation9 + $0x3a8] sm:$0xff]
    %v1025 = vld [vmem:[#allocation9 + $0x3b0] sm:$0xff]
    %v1026 = vld [vmem:[#allocation9 + $0x3b8] sm:$0xff]
    %v1027 = vld [vmem:[#allocation9 + $0x3c0] sm:$0xff]
    %v1028 = vld [vmem:[#allocation9 + $0x3c8] sm:$0xff]
    %v1029 = vld [vmem:[#allocation9 + $0x3d0] sm:$0xff]
    %v1030 = vld [vmem:[#allocation9 + $0x3d8] sm:$0xff]
    %v1031 = vld [vmem:[#allocation9 + $0x3e0] sm:$0xff]
    %v1032 = vld [vmem:[#allocation9 + $0x3e8] sm:$0xff]
    %v1033 = vld [vmem:[#allocation9 + $0x3f0] sm:$0xff]
    %v1034 = vld [vmem:[#allocation9 + $0x3f8] sm:$0xff]
    %v1035 = vunpack.c.l.s8.bf16 %v907
    %v1036 = vunpack.c.l.s8.bf16 %v908
    %v1037 = vunpack.c.l.s8.bf16 %v909
    %v1038 = vunpack.c.l.s8.bf16 %v910
    %v1039 = vunpack.c.h.s8.bf16 %v907
    %v1040 = vunpack.c.h.s8.bf16 %v908
    %v1041 = vunpack.c.h.s8.bf16 %v909
    %v1042 = vunpack.c.h.s8.bf16 %v910
    %v1043 = vunpack.c.l.s8.bf16 %v911
    %v1044 = vunpack.c.l.s8.bf16 %v912
    %v1045 = vunpack.c.l.s8.bf16 %v913
    %v1046 = vunpack.c.l.s8.bf16 %v914
    %v1047 = vunpack.c.h.s8.bf16 %v911
    %v1048 = vunpack.c.h.s8.bf16 %v912
    %v1049 = vunpack.c.h.s8.bf16 %v913
    %v1050 = vunpack.c.h.s8.bf16 %v914
    %v1051 = vunpack.c.l.s8.bf16 %v915
    %v1052 = vunpack.c.l.s8.bf16 %v916
    %v1053 = vunpack.c.l.s8.bf16 %v917
    %v1054 = vunpack.c.l.s8.bf16 %v918
    %v1055 = vunpack.c.h.s8.bf16 %v915
    %v1056 = vunpack.c.h.s8.bf16 %v916
    %v1057 = vunpack.c.h.s8.bf16 %v917
    %v1058 = vunpack.c.h.s8.bf16 %v918
    %v1059 = vunpack.c.l.s8.bf16 %v919
    %v1060 = vunpack.c.l.s8.bf16 %v920
    %v1061 = vunpack.c.l.s8.bf16 %v921
    %v1062 = vunpack.c.l.s8.bf16 %v922
    %v1063 = vunpack.c.h.s8.bf16 %v919
    %v1064 = vunpack.c.h.s8.bf16 %v920
    %v1065 = vunpack.c.h.s8.bf16 %v921
    %v1066 = vunpack.c.h.s8.bf16 %v922
    %v1067 = vunpack.c.l.s8.bf16 %v923
    %v1068 = vunpack.c.l.s8.bf16 %v924
    %v1069 = vunpack.c.l.s8.bf16 %v925
    %v1070 = vunpack.c.l.s8.bf16 %v926
    %v1071 = vunpack.c.h.s8.bf16 %v923
    %v1072 = vunpack.c.h.s8.bf16 %v924
    %v1073 = vunpack.c.h.s8.bf16 %v925
    %v1074 = vunpack.c.h.s8.bf16 %v926
    %v1075 = vunpack.c.l.s8.bf16 %v927
    %v1076 = vunpack.c.l.s8.bf16 %v928
    %v1077 = vunpack.c.l.s8.bf16 %v929
    %v1078 = vunpack.c.l.s8.bf16 %v930
    %v1079 = vunpack.c.h.s8.bf16 %v927
    %v1080 = vunpack.c.h.s8.bf16 %v928
    %v1081 = vunpack.c.h.s8.bf16 %v929
    %v1082 = vunpack.c.h.s8.bf16 %v930
    %v1083 = vunpack.c.l.s8.bf16 %v931
    %v1084 = vunpack.c.l.s8.bf16 %v932
    %v1085 = vunpack.c.l.s8.bf16 %v933
    %v1086 = vunpack.c.l.s8.bf16 %v934
    %v1087 = vunpack.c.h.s8.bf16 %v931
    %v1088 = vunpack.c.h.s8.bf16 %v932
    %v1089 = vunpack.c.h.s8.bf16 %v933
    %v1090 = vunpack.c.h.s8.bf16 %v934
    %v1091 = vunpack.c.l.s8.bf16 %v935
    %v1092 = vunpack.c.l.s8.bf16 %v936
    %v1093 = vunpack.c.l.s8.bf16 %v937
    %v1094 = vunpack.c.l.s8.bf16 %v938
    %v1095 = vunpack.c.h.s8.bf16 %v935
    %v1096 = vunpack.c.h.s8.bf16 %v936
    %v1097 = vunpack.c.h.s8.bf16 %v937
    %v1098 = vunpack.c.h.s8.bf16 %v938
    %v1099 = vunpack.c.l.s8.bf16 %v939
    %v1100 = vunpack.c.l.s8.bf16 %v940
    %v1101 = vunpack.c.l.s8.bf16 %v941
    %v1102 = vunpack.c.l.s8.bf16 %v942
    %v1103 = vunpack.c.h.s8.bf16 %v939
    %v1104 = vunpack.c.h.s8.bf16 %v940
    %v1105 = vunpack.c.h.s8.bf16 %v941
    %v1106 = vunpack.c.h.s8.bf16 %v942
    %v1107 = vunpack.c.l.s8.bf16 %v943
    %v1108 = vunpack.c.l.s8.bf16 %v944
    %v1109 = vunpack.c.l.s8.bf16 %v945
    %v1110 = vunpack.c.l.s8.bf16 %v946
    %v1111 = vunpack.c.h.s8.bf16 %v943
    %v1112 = vunpack.c.h.s8.bf16 %v944
    %v1113 = vunpack.c.h.s8.bf16 %v945
    %v1114 = vunpack.c.h.s8.bf16 %v946
    %v1115 = vunpack.c.l.s8.bf16 %v947
    %v1116 = vunpack.c.l.s8.bf16 %v948
    %v1117 = vunpack.c.l.s8.bf16 %v949
    %v1118 = vunpack.c.l.s8.bf16 %v950
    %v1119 = vunpack.c.h.s8.bf16 %v947
    %v1120 = vunpack.c.h.s8.bf16 %v948
    %v1121 = vunpack.c.h.s8.bf16 %v949
    %v1122 = vunpack.c.h.s8.bf16 %v950
    %v1123 = vunpack.c.l.s8.bf16 %v951
    %v1124 = vunpack.c.l.s8.bf16 %v952
    %v1125 = vunpack.c.l.s8.bf16 %v953
    %v1126 = vunpack.c.l.s8.bf16 %v954
    %v1127 = vunpack.c.h.s8.bf16 %v951
    %v1128 = vunpack.c.h.s8.bf16 %v952
    %v1129 = vunpack.c.h.s8.bf16 %v953
    %v1130 = vunpack.c.h.s8.bf16 %v954
    %v1131 = vunpack.c.l.s8.bf16 %v955
    %v1132 = vunpack.c.l.s8.bf16 %v956
    %v1133 = vunpack.c.l.s8.bf16 %v957
    %v1134 = vunpack.c.l.s8.bf16 %v958
    %v1135 = vunpack.c.h.s8.bf16 %v955
    %v1136 = vunpack.c.h.s8.bf16 %v956
    %v1137 = vunpack.c.h.s8.bf16 %v957
    %v1138 = vunpack.c.h.s8.bf16 %v958
    %v1139 = vunpack.c.l.s8.bf16 %v959
    %v1140 = vunpack.c.l.s8.bf16 %v960
    %v1141 = vunpack.c.l.s8.bf16 %v961
    %v1142 = vunpack.c.l.s8.bf16 %v962
    %v1143 = vunpack.c.h.s8.bf16 %v959
    %v1144 = vunpack.c.h.s8.bf16 %v960
    %v1145 = vunpack.c.h.s8.bf16 %v961
    %v1146 = vunpack.c.h.s8.bf16 %v962
    %v1147 = vunpack.c.l.s8.bf16 %v963
    %v1148 = vunpack.c.l.s8.bf16 %v964
    %v1149 = vunpack.c.l.s8.bf16 %v965
    %v1150 = vunpack.c.l.s8.bf16 %v966
    %v1151 = vunpack.c.h.s8.bf16 %v963
    %v1152 = vunpack.c.h.s8.bf16 %v964
    %v1153 = vunpack.c.h.s8.bf16 %v965
    %v1154 = vunpack.c.h.s8.bf16 %v966
    %v1155 = vunpack.c.l.s8.bf16 %v967
    %v1156 = vunpack.c.l.s8.bf16 %v968
    %v1157 = vunpack.c.l.s8.bf16 %v969
    %v1158 = vunpack.c.l.s8.bf16 %v970
    %v1159 = vunpack.c.h.s8.bf16 %v967
    %v1160 = vunpack.c.h.s8.bf16 %v968
    %v1161 = vunpack.c.h.s8.bf16 %v969
    %v1162 = vunpack.c.h.s8.bf16 %v970
    %v1163 = vunpack.c.l.s8.bf16 %v971
    %v1164 = vunpack.c.l.s8.bf16 %v972
    %v1165 = vunpack.c.l.s8.bf16 %v973
    %v1166 = vunpack.c.l.s8.bf16 %v974
    %v1167 = vunpack.c.h.s8.bf16 %v971
    %v1168 = vunpack.c.h.s8.bf16 %v972
    %v1169 = vunpack.c.h.s8.bf16 %v973
    %v1170 = vunpack.c.h.s8.bf16 %v974
    %v1171 = vunpack.c.l.s8.bf16 %v975
    %v1172 = vunpack.c.l.s8.bf16 %v976
    %v1173 = vunpack.c.l.s8.bf16 %v977
    %v1174 = vunpack.c.l.s8.bf16 %v978
    %v1175 = vunpack.c.h.s8.bf16 %v975
    %v1176 = vunpack.c.h.s8.bf16 %v976
    %v1177 = vunpack.c.h.s8.bf16 %v977
    %v1178 = vunpack.c.h.s8.bf16 %v978
    %v1179 = vunpack.c.l.s8.bf16 %v979
    %v1180 = vunpack.c.l.s8.bf16 %v980
    %v1181 = vunpack.c.l.s8.bf16 %v981
    %v1182 = vunpack.c.l.s8.bf16 %v982
    %v1183 = vunpack.c.h.s8.bf16 %v979
    %v1184 = vunpack.c.h.s8.bf16 %v980
    %v1185 = vunpack.c.h.s8.bf16 %v981
    %v1186 = vunpack.c.h.s8.bf16 %v982
    %v1187 = vunpack.c.l.s8.bf16 %v983
    %v1188 = vunpack.c.l.s8.bf16 %v984
    %v1189 = vunpack.c.l.s8.bf16 %v985
    %v1190 = vunpack.c.l.s8.bf16 %v986
    %v1191 = vunpack.c.h.s8.bf16 %v983
    %v1192 = vunpack.c.h.s8.bf16 %v984
    %v1193 = vunpack.c.h.s8.bf16 %v985
    %v1194 = vunpack.c.h.s8.bf16 %v986
    %v1195 = vunpack.c.l.s8.bf16 %v987
    %v1196 = vunpack.c.l.s8.bf16 %v988
    %v1197 = vunpack.c.l.s8.bf16 %v989
    %v1198 = vunpack.c.l.s8.bf16 %v990
    %v1199 = vunpack.c.h.s8.bf16 %v987
    %v1200 = vunpack.c.h.s8.bf16 %v988
    %v1201 = vunpack.c.h.s8.bf16 %v989
    %v1202 = vunpack.c.h.s8.bf16 %v990
    %v1203 = vunpack.c.l.s8.bf16 %v991
    %v1204 = vunpack.c.l.s8.bf16 %v992
    %v1205 = vunpack.c.l.s8.bf16 %v993
    %v1206 = vunpack.c.l.s8.bf16 %v994
    %v1207 = vunpack.c.h.s8.bf16 %v991
    %v1208 = vunpack.c.h.s8.bf16 %v992
    %v1209 = vunpack.c.h.s8.bf16 %v993
    %v1210 = vunpack.c.h.s8.bf16 %v994
    %v1211 = vunpack.c.l.s8.bf16 %v995
    %v1212 = vunpack.c.l.s8.bf16 %v996
    %v1213 = vunpack.c.l.s8.bf16 %v997
    %v1214 = vunpack.c.l.s8.bf16 %v998
    %v1215 = vunpack.c.h.s8.bf16 %v995
    %v1216 = vunpack.c.h.s8.bf16 %v996
    %v1217 = vunpack.c.h.s8.bf16 %v997
    %v1218 = vunpack.c.h.s8.bf16 %v998
    %v1219 = vunpack.c.l.s8.bf16 %v999
    %v1220 = vunpack.c.l.s8.bf16 %v1000
    %v1221 = vunpack.c.l.s8.bf16 %v1001
    %v1222 = vunpack.c.l.s8.bf16 %v1002
    %v1223 = vunpack.c.h.s8.bf16 %v999
    %v1224 = vunpack.c.h.s8.bf16 %v1000
    %v1225 = vunpack.c.h.s8.bf16 %v1001
    %v1226 = vunpack.c.h.s8.bf16 %v1002
    %v1227 = vunpack.c.l.s8.bf16 %v1003
    %v1228 = vunpack.c.l.s8.bf16 %v1004
    %v1229 = vunpack.c.l.s8.bf16 %v1005
    %v1230 = vunpack.c.l.s8.bf16 %v1006
    %v1231 = vunpack.c.h.s8.bf16 %v1003
    %v1232 = vunpack.c.h.s8.bf16 %v1004
    %v1233 = vunpack.c.h.s8.bf16 %v1005
    %v1234 = vunpack.c.h.s8.bf16 %v1006
    %v1235 = vunpack.c.l.s8.bf16 %v1007
    %v1236 = vunpack.c.l.s8.bf16 %v1008
    %v1237 = vunpack.c.l.s8.bf16 %v1009
    %v1238 = vunpack.c.l.s8.bf16 %v1010
    %v1239 = vunpack.c.h.s8.bf16 %v1007
    %v1240 = vunpack.c.h.s8.bf16 %v1008
    %v1241 = vunpack.c.h.s8.bf16 %v1009
    %v1242 = vunpack.c.h.s8.bf16 %v1010
    %v1243 = vunpack.c.l.s8.bf16 %v1011
    %v1244 = vunpack.c.l.s8.bf16 %v1012
    %v1245 = vunpack.c.l.s8.bf16 %v1013
    %v1246 = vunpack.c.l.s8.bf16 %v1014
    %v1247 = vunpack.c.h.s8.bf16 %v1011
    %v1248 = vunpack.c.h.s8.bf16 %v1012
    %v1249 = vunpack.c.h.s8.bf16 %v1013
    %v1250 = vunpack.c.h.s8.bf16 %v1014
    %v1251 = vunpack.c.l.s8.bf16 %v1015
    %v1252 = vunpack.c.l.s8.bf16 %v1016
    %v1253 = vunpack.c.l.s8.bf16 %v1017
    %v1254 = vunpack.c.l.s8.bf16 %v1018
    %v1255 = vunpack.c.h.s8.bf16 %v1015
    %v1256 = vunpack.c.h.s8.bf16 %v1016
    %v1257 = vunpack.c.h.s8.bf16 %v1017
    %v1258 = vunpack.c.h.s8.bf16 %v1018
    %v1259 = vunpack.c.l.s8.bf16 %v1019
    %v1260 = vunpack.c.l.s8.bf16 %v1020
    %v1261 = vunpack.c.l.s8.bf16 %v1021
    %v1262 = vunpack.c.l.s8.bf16 %v1022
    %v1263 = vunpack.c.h.s8.bf16 %v1019
    %v1264 = vunpack.c.h.s8.bf16 %v1020
    %v1265 = vunpack.c.h.s8.bf16 %v1021
    %v1266 = vunpack.c.h.s8.bf16 %v1022
    %v1267 = vunpack.c.l.s8.bf16 %v1023
    %v1268 = vunpack.c.l.s8.bf16 %v1024
    %v1269 = vunpack.c.l.s8.bf16 %v1025
    %v1270 = vunpack.c.l.s8.bf16 %v1026
    %v1271 = vunpack.c.h.s8.bf16 %v1023
    %v1272 = vunpack.c.h.s8.bf16 %v1024
    %v1273 = vunpack.c.h.s8.bf16 %v1025
    %v1274 = vunpack.c.h.s8.bf16 %v1026
    %v1275 = vunpack.c.l.s8.bf16 %v1027
    %v1276 = vunpack.c.l.s8.bf16 %v1028
    %v1277 = vunpack.c.l.s8.bf16 %v1029
    %v1278 = vunpack.c.l.s8.bf16 %v1030
    %v1279 = vunpack.c.h.s8.bf16 %v1027
    %v1280 = vunpack.c.h.s8.bf16 %v1028
    %v1281 = vunpack.c.h.s8.bf16 %v1029
    %v1282 = vunpack.c.h.s8.bf16 %v1030
    %v1283 = vunpack.c.l.s8.bf16 %v1031
    %v1284 = vunpack.c.l.s8.bf16 %v1032
    %v1285 = vunpack.c.l.s8.bf16 %v1033
    %v1286 = vunpack.c.l.s8.bf16 %v1034
    %v1287 = vunpack.c.h.s8.bf16 %v1031
    %v1288 = vunpack.c.h.s8.bf16 %v1032
    %v1289 = vunpack.c.h.s8.bf16 %v1033
    %v1290 = vunpack.c.h.s8.bf16 %v1034
    %1291 = vmatprep.subr.bf16.mxu0 %v1036
    %1292 = vmatpush1.bf16.msra.mxu0 %v1035
    %1293 = vmatprep.subr.bf16.mxu0 %v1040
    %1294 = vmatpush1.bf16.msra.mxu0 %v1039
    %1295 = vmatprep.subr.bf16.mxu0 %v1044
    %1296 = vmatpush1.bf16.msra.mxu0 %v1043
    %1297 = vmatprep.subr.bf16.mxu0 %v1048
    %1298 = vmatpush1.bf16.msra.mxu0 %v1047
    %1299 = vmatprep.subr.bf16.mxu0 %v1052
    %1300 = vmatpush1.bf16.msra.mxu0 %v1051
    %1301 = vmatprep.subr.bf16.mxu0 %v1056
    %1302 = vmatpush1.bf16.msra.mxu0 %v1055
    %1303 = vmatprep.subr.bf16.mxu0 %v1060
    %1304 = vmatpush1.bf16.msra.mxu0 %v1059
    %1305 = vmatprep.subr.bf16.mxu0 %v1064
    %1306 = vmatpush1.bf16.msra.mxu0 %v1063
    %1307 = vmatprep.subr.bf16.mxu0 %v1068
    %1308 = vmatpush1.bf16.msra.mxu0 %v1067
    %1309 = vmatprep.subr.bf16.mxu0 %v1072
    %1310 = vmatpush1.bf16.msra.mxu0 %v1071
    %1311 = vmatprep.subr.bf16.mxu0 %v1076
    %1312 = vmatpush1.bf16.msra.mxu0 %v1075
    %1313 = vmatprep.subr.bf16.mxu0 %v1080
    %1314 = vmatpush1.bf16.msra.mxu0 %v1079
    %1315 = vmatprep.subr.bf16.mxu0 %v1084
    %1316 = vmatpush1.bf16.msra.mxu0 %v1083
    %1317 = vmatprep.subr.bf16.mxu0 %v1088
    %1318 = vmatpush1.bf16.msra.mxu0 %v1087
    %1319 = vmatprep.subr.bf16.mxu0 %v1092
    %1320 = vmatpush1.bf16.msra.mxu0 %v1091
    %1321 = vmatprep.subr.bf16.mxu0 %v1096
    %1322 = vmatpush1.bf16.msra.mxu0 %v1095
    %1323 = vmatprep.mubr.bf16.mxu0 %v900
    %1324 = vmatmul.mubr.bf16.gmra.mrb[0].mxu0 %v899
    %v1325 = vpop.f32.mrb[0].mxu0
    %v1326 = vadd.f32 0.0, %v1325
    %v1327 = vpop.f32.mrb[0].mxu0
    %v1328 = vadd.f32 0.0, %v1327
    %v1329 = vpop.f32.mrb[0].mxu0
    %v1330 = vpop.f32.mrb[0].mxu0
    %1331 = vdwg.mxu0
    %1332 = vmatprep.subr.bf16.mxu0 %v1100
    %1333 = vmatpush1.bf16.msra.mxu0 %v1099
    %1334 = vmatprep.subr.bf16.mxu0 %v1104
    %1335 = vmatpush1.bf16.msra.mxu0 %v1103
    %1336 = vmatprep.subr.bf16.mxu0 %v1108
    %1337 = vmatpush1.bf16.msra.mxu0 %v1107
    %1338 = vmatprep.subr.bf16.mxu0 %v1112
    %1339 = vmatpush1.bf16.msra.mxu0 %v1111
    %1340 = vmatprep.subr.bf16.mxu0 %v1116
    %1341 = vmatpush1.bf16.msra.mxu0 %v1115
    %1342 = vmatprep.subr.bf16.mxu0 %v1120
    %1343 = vmatpush1.bf16.msra.mxu0 %v1119
    %1344 = vmatprep.subr.bf16.mxu0 %v1124
    %1345 = vmatpush1.bf16.msra.mxu0 %v1123
    %1346 = vmatprep.subr.bf16.mxu0 %v1128
    %1347 = vmatpush1.bf16.msra.mxu0 %v1127
    %1348 = vmatprep.subr.bf16.mxu0 %v1132
    %1349 = vmatpush1.bf16.msra.mxu0 %v1131
    %1350 = vmatprep.subr.bf16.mxu0 %v1136
    %1351 = vmatpush1.bf16.msra.mxu0 %v1135
    %1352 = vmatprep.subr.bf16.mxu0 %v1140
    %1353 = vmatpush1.bf16.msra.mxu0 %v1139
    %1354 = vmatprep.subr.bf16.mxu0 %v1144
    %1355 = vmatpush1.bf16.msra.mxu0 %v1143
    %1356 = vmatprep.subr.bf16.mxu0 %v1148
    %1357 = vmatpush1.bf16.msra.mxu0 %v1147
    %1358 = vmatprep.subr.bf16.mxu0 %v1152
    %1359 = vmatpush1.bf16.msra.mxu0 %v1151
    %1360 = vmatprep.subr.bf16.mxu0 %v1156
    %1361 = vmatpush1.bf16.msra.mxu0 %v1155
    %1362 = vmatprep.subr.bf16.mxu0 %v1160
    %1363 = vmatpush1.bf16.msra.mxu0 %v1159
    %1364 = vmatprep.mubr.bf16.mxu0 %v902
    %1365 = vmatmul.mubr.bf16.gmra.mrb[0].mxu0 %v901
    %v1366 = vpop.f32.mrb[0].mxu0
    %v1367 = vadd.f32 %v1326, %v1366
    %v1368 = vpop.f32.mrb[0].mxu0
    %v1369 = vadd.f32 %v1328, %v1368
    %v1370 = vpop.f32.mrb[0].mxu0
    %v1371 = vpop.f32.mrb[0].mxu0
    %1372 = vdwg.mxu0
    %1373 = vmatprep.subr.bf16.mxu0 %v1164
    %1374 = vmatpush1.bf16.msra.mxu0 %v1163
    %1375 = vmatprep.subr.bf16.mxu0 %v1168
    %1376 = vmatpush1.bf16.msra.mxu0 %v1167
    %1377 = vmatprep.subr.bf16.mxu0 %v1172
    %1378 = vmatpush1.bf16.msra.mxu0 %v1171
    %1379 = vmatprep.subr.bf16.mxu0 %v1176
    %1380 = vmatpush1.bf16.msra.mxu0 %v1175
    %1381 = vmatprep.subr.bf16.mxu0 %v1180
    %1382 = vmatpush1.bf16.msra.mxu0 %v1179
    %1383 = vmatprep.subr.bf16.mxu0 %v1184
    %1384 = vmatpush1.bf16.msra.mxu0 %v1183
    %1385 = vmatprep.subr.bf16.mxu0 %v1188
    %1386 = vmatpush1.bf16.msra.mxu0 %v1187
    %1387 = vmatprep.subr.bf16.mxu0 %v1192
    %1388 = vmatpush1.bf16.msra.mxu0 %v1191
    %1389 = vmatprep.subr.bf16.mxu0 %v1196
    %1390 = vmatpush1.bf16.msra.mxu0 %v1195
    %1391 = vmatprep.subr.bf16.mxu0 %v1200
    %1392 = vmatpush1.bf16.msra.mxu0 %v1199
    %1393 = vmatprep.subr.bf16.mxu0 %v1204
    %1394 = vmatpush1.bf16.msra.mxu0 %v1203
    %1395 = vmatprep.subr.bf16.mxu0 %v1208
    %1396 = vmatpush1.bf16.msra.mxu0 %v1207
    %1397 = vmatprep.subr.bf16.mxu0 %v1212
    %1398 = vmatpush1.bf16.msra.mxu0 %v1211
    %1399 = vmatprep.subr.bf16.mxu0 %v1216
    %1400 = vmatpush1.bf16.msra.mxu0 %v1215
    %1401 = vmatprep.subr.bf16.mxu0 %v1220
    %1402 = vmatpush1.bf16.msra.mxu0 %v1219
    %1403 = vmatprep.subr.bf16.mxu0 %v1224
    %1404 = vmatpush1.bf16.msra.mxu0 %v1223
    %1405 = vmatprep.mubr.bf16.mxu0 %v904
    %1406 = vmatmul.mubr.bf16.gmra.mrb[0].mxu0 %v903
    %v1407 = vpop.f32.mrb[0].mxu0
    %v1408 = vadd.f32 %v1367, %v1407
    %v1409 = vpop.f32.mrb[0].mxu0
    %v1410 = vadd.f32 %v1369, %v1409
    %v1411 = vpop.f32.mrb[0].mxu0
    %v1412 = vpop.f32.mrb[0].mxu0
    %1413 = vdwg.mxu0
    %1414 = vmatprep.subr.bf16.mxu0 %v1228
    %1415 = vmatpush1.bf16.msra.mxu0 %v1227
    %1416 = vmatprep.subr.bf16.mxu0 %v1232
    %1417 = vmatpush1.bf16.msra.mxu0 %v1231
    %1418 = vmatprep.subr.bf16.mxu0 %v1236
    %1419 = vmatpush1.bf16.msra.mxu0 %v1235
    %1420 = vmatprep.subr.bf16.mxu0 %v1240
    %1421 = vmatpush1.bf16.msra.mxu0 %v1239
    %1422 = vmatprep.subr.bf16.mxu0 %v1244
    %1423 = vmatpush1.bf16.msra.mxu0 %v1243
    %1424 = vmatprep.subr.bf16.mxu0 %v1248
    %1425 = vmatpush1.bf16.msra.mxu0 %v1247
    %1426 = vmatprep.subr.bf16.mxu0 %v1252
    %1427 = vmatpush1.bf16.msra.mxu0 %v1251
    %1428 = vmatprep.subr.bf16.mxu0 %v1256
    %1429 = vmatpush1.bf16.msra.mxu0 %v1255
    %1430 = vmatprep.subr.bf16.mxu0 %v1260
    %1431 = vmatpush1.bf16.msra.mxu0 %v1259
    %1432 = vmatprep.subr.bf16.mxu0 %v1264
    %1433 = vmatpush1.bf16.msra.mxu0 %v1263
    %1434 = vmatprep.subr.bf16.mxu0 %v1268
    %1435 = vmatpush1.bf16.msra.mxu0 %v1267
    %1436 = vmatprep.subr.bf16.mxu0 %v1272
    %1437 = vmatpush1.bf16.msra.mxu0 %v1271
    %1438 = vmatprep.subr.bf16.mxu0 %v1276
    %1439 = vmatpush1.bf16.msra.mxu0 %v1275
    %1440 = vmatprep.subr.bf16.mxu0 %v1280
    %1441 = vmatpush1.bf16.msra.mxu0 %v1279
    %1442 = vmatprep.subr.bf16.mxu0 %v1284
    %1443 = vmatpush1.bf16.msra.mxu0 %v1283
    %1444 = vmatprep.subr.bf16.mxu0 %v1288
    %1445 = vmatpush1.bf16.msra.mxu0 %v1287
    %1446 = vmatprep.mubr.bf16.mxu0 %v906
    %1447 = vmatmul.mubr.bf16.gmra.mrb[0].mxu0 %v905
    %v1448 = vpop.f32.mrb[0].mxu0
    %v1449 = vadd.f32 %v1408, %v1448
    %v1450 = vpop.f32.mrb[0].mxu0
    %v1451 = vadd.f32 %v1410, %v1450
    %v1452 = vpop.f32.mrb[0].mxu0
    %v1453 = vpop.f32.mrb[0].mxu0
    %1454 = vdwg.mxu0
    %1455 = vmatprep.subr.bf16.mxu0 %v1038
    %1456 = vmatpush1.bf16.msra.mxu0 %v1037
    %1457 = vmatprep.subr.bf16.mxu0 %v1042
    %1458 = vmatpush1.bf16.msra.mxu0 %v1041
    %1459 = vmatprep.subr.bf16.mxu0 %v1046
    %1460 = vmatpush1.bf16.msra.mxu0 %v1045
    %1461 = vmatprep.subr.bf16.mxu0 %v1050
    %1462 = vmatpush1.bf16.msra.mxu0 %v1049
    %1463 = vmatprep.subr.bf16.mxu0 %v1054
    %1464 = vmatpush1.bf16.msra.mxu0 %v1053
    %1465 = vmatprep.subr.bf16.mxu0 %v1058
    %1466 = vmatpush1.bf16.msra.mxu0 %v1057
    %1467 = vmatprep.subr.bf16.mxu0 %v1062
    %1468 = vmatpush1.bf16.msra.mxu0 %v1061
    %1469 = vmatprep.subr.bf16.mxu0 %v1066
    %1470 = vmatpush1.bf16.msra.mxu0 %v1065
    %1471 = vmatprep.subr.bf16.mxu0 %v1070
    %1472 = vmatpush1.bf16.msra.mxu0 %v1069
    %1473 = vmatprep.subr.bf16.mxu0 %v1074
    %1474 = vmatpush1.bf16.msra.mxu0 %v1073
    %1475 = vmatprep.subr.bf16.mxu0 %v1078
    %1476 = vmatpush1.bf16.msra.mxu0 %v1077
    %1477 = vmatprep.subr.bf16.mxu0 %v1082
    %1478 = vmatpush1.bf16.msra.mxu0 %v1081
    %1479 = vmatprep.subr.bf16.mxu0 %v1086
    %1480 = vmatpush1.bf16.msra.mxu0 %v1085
    %1481 = vmatprep.subr.bf16.mxu0 %v1090
    %1482 = vmatpush1.bf16.msra.mxu0 %v1089
    %1483 = vmatprep.subr.bf16.mxu0 %v1094
    %1484 = vmatpush1.bf16.msra.mxu0 %v1093
    %1485 = vmatprep.subr.bf16.mxu0 %v1098
    %1486 = vmatpush1.bf16.msra.mxu0 %v1097
    %1487 = vmatprep.mubr.bf16.mxu0 %v900
    %1488 = vmatmul.mubr.bf16.gmra.mrb[0].mxu0 %v899
    %v1489 = vpop.f32.mrb[0].mxu0
    %v1490 = vadd.f32 0.0, %v1489
    %v1491 = vpop.f32.mrb[0].mxu0
    %v1492 = vadd.f32 0.0, %v1491
    %v1493 = vpop.f32.mrb[0].mxu0
    %v1494 = vpop.f32.mrb[0].mxu0
    %1495 = vdwg.mxu0
    %1496 = vmatprep.subr.bf16.mxu0 %v1102
    %1497 = vmatpush1.bf16.msra.mxu0 %v1101
    %1498 = vmatprep.subr.bf16.mxu0 %v1106
    %1499 = vmatpush1.bf16.msra.mxu0 %v1105
    %1500 = vmatprep.subr.bf16.mxu0 %v1110
    %1501 = vmatpush1.bf16.msra.mxu0 %v1109
    %1502 = vmatprep.subr.bf16.mxu0 %v1114
    %1503 = vmatpush1.bf16.msra.mxu0 %v1113
    %1504 = vmatprep.subr.bf16.mxu0 %v1118
    %1505 = vmatpush1.bf16.msra.mxu0 %v1117
    %1506 = vmatprep.subr.bf16.mxu0 %v1122
    %1507 = vmatpush1.bf16.msra.mxu0 %v1121
    %1508 = vmatprep.subr.bf16.mxu0 %v1126
    %1509 = vmatpush1.bf16.msra.mxu0 %v1125
    %1510 = vmatprep.subr.bf16.mxu0 %v1130
    %1511 = vmatpush1.bf16.msra.mxu0 %v1129
    %1512 = vmatprep.subr.bf16.mxu0 %v1134
    %1513 = vmatpush1.bf16.msra.mxu0 %v1133
    %1514 = vmatprep.subr.bf16.mxu0 %v1138
    %1515 = vmatpush1.bf16.msra.mxu0 %v1137
    %1516 = vmatprep.subr.bf16.mxu0 %v1142
    %1517 = vmatpush1.bf16.msra.mxu0 %v1141
    %1518 = vmatprep.subr.bf16.mxu0 %v1146
    %1519 = vmatpush1.bf16.msra.mxu0 %v1145
    %1520 = vmatprep.subr.bf16.mxu0 %v1150
    %1521 = vmatpush1.bf16.msra.mxu0 %v1149
    %1522 = vmatprep.subr.bf16.mxu0 %v1154
    %1523 = vmatpush1.bf16.msra.mxu0 %v1153
    %1524 = vmatprep.subr.bf16.mxu0 %v1158
    %1525 = vmatpush1.bf16.msra.mxu0 %v1157
    %1526 = vmatprep.subr.bf16.mxu0 %v1162
    %1527 = vmatpush1.bf16.msra.mxu0 %v1161
    %1528 = vmatprep.mubr.bf16.mxu0 %v902
    %1529 = vmatmul.mubr.bf16.gmra.mrb[0].mxu0 %v901
    %v1530 = vpop.f32.mrb[0].mxu0
    %v1531 = vadd.f32 %v1490, %v1530
    %v1532 = vpop.f32.mrb[0].mxu0
    %v1533 = vadd.f32 %v1492, %v1532
    %v1534 = vpop.f32.mrb[0].mxu0
    %v1535 = vpop.f32.mrb[0].mxu0
    %1536 = vdwg.mxu0
    %1537 = vmatprep.subr.bf16.mxu0 %v1166
    %1538 = vmatpush1.bf16.msra.mxu0 %v1165
    %1539 = vmatprep.subr.bf16.mxu0 %v1170
    %1540 = vmatpush1.bf16.msra.mxu0 %v1169
    %1541 = vmatprep.subr.bf16.mxu0 %v1174
    %1542 = vmatpush1.bf16.msra.mxu0 %v1173
    %1543 = vmatprep.subr.bf16.mxu0 %v1178
    %1544 = vmatpush1.bf16.msra.mxu0 %v1177
    %1545 = vmatprep.subr.bf16.mxu0 %v1182
    %1546 = vmatpush1.bf16.msra.mxu0 %v1181
    %1547 = vmatprep.subr.bf16.mxu0 %v1186
    %1548 = vmatpush1.bf16.msra.mxu0 %v1185
    %1549 = vmatprep.subr.bf16.mxu0 %v1190
    %1550 = vmatpush1.bf16.msra.mxu0 %v1189
    %1551 = vmatprep.subr.bf16.mxu0 %v1194
    %1552 = vmatpush1.bf16.msra.mxu0 %v1193
    %1553 = vmatprep.subr.bf16.mxu0 %v1198
    %1554 = vmatpush1.bf16.msra.mxu0 %v1197
    %1555 = vmatprep.subr.bf16.mxu0 %v1202
    %1556 = vmatpush1.bf16.msra.mxu0 %v1201
    %1557 = vmatprep.subr.bf16.mxu0 %v1206
    %1558 = vmatpush1.bf16.msra.mxu0 %v1205
    %1559 = vmatprep.subr.bf16.mxu0 %v1210
    %1560 = vmatpush1.bf16.msra.mxu0 %v1209
    %1561 = vmatprep.subr.bf16.mxu0 %v1214
    %1562 = vmatpush1.bf16.msra.mxu0 %v1213
    %1563 = vmatprep.subr.bf16.mxu0 %v1218
    %1564 = vmatpush1.bf16.msra.mxu0 %v1217
    %1565 = vmatprep.subr.bf16.mxu0 %v1222
    %1566 = vmatpush1.bf16.msra.mxu0 %v1221
    %1567 = vmatprep.subr.bf16.mxu0 %v1226
    %1568 = vmatpush1.bf16.msra.mxu0 %v1225
    %1569 = vmatprep.mubr.bf16.mxu0 %v904
    %1570 = vmatmul.mubr.bf16.gmra.mrb[0].mxu0 %v903
    %v1571 = vpop.f32.mrb[0].mxu0
    %v1572 = vadd.f32 %v1531, %v1571
    %v1573 = vpop.f32.mrb[0].mxu0
    %v1574 = vadd.f32 %v1533, %v1573
    %v1575 = vpop.f32.mrb[0].mxu0
    %v1576 = vpop.f32.mrb[0].mxu0
    %1577 = vdwg.mxu0
    %1578 = vmatprep.subr.bf16.mxu0 %v1230
    %1579 = vmatpush1.bf16.msra.mxu0 %v1229
    %1580 = vmatprep.subr.bf16.mxu0 %v1234
    %1581 = vmatpush1.bf16.msra.mxu0 %v1233
    %1582 = vmatprep.subr.bf16.mxu0 %v1238
    %1583 = vmatpush1.bf16.msra.mxu0 %v1237
    %1584 = vmatprep.subr.bf16.mxu0 %v1242
    %1585 = vmatpush1.bf16.msra.mxu0 %v1241
    %1586 = vmatprep.subr.bf16.mxu0 %v1246
    %1587 = vmatpush1.bf16.msra.mxu0 %v1245
    %1588 = vmatprep.subr.bf16.mxu0 %v1250
    %1589 = vmatpush1.bf16.msra.mxu0 %v1249
    %1590 = vmatprep.subr.bf16.mxu0 %v1254
    %1591 = vmatpush1.bf16.msra.mxu0 %v1253
    %1592 = vmatprep.subr.bf16.mxu0 %v1258
    %1593 = vmatpush1.bf16.msra.mxu0 %v1257
    %1594 = vmatprep.subr.bf16.mxu0 %v1262
    %1595 = vmatpush1.bf16.msra.mxu0 %v1261
    %1596 = vmatprep.subr.bf16.mxu0 %v1266
    %1597 = vmatpush1.bf16.msra.mxu0 %v1265
    %1598 = vmatprep.subr.bf16.mxu0 %v1270
    %1599 = vmatpush1.bf16.msra.mxu0 %v1269
    %1600 = vmatprep.subr.bf16.mxu0 %v1274
    %1601 = vmatpush1.bf16.msra.mxu0 %v1273
    %1602 = vmatprep.subr.bf16.mxu0 %v1278
    %1603 = vmatpush1.bf16.msra.mxu0 %v1277
    %1604 = vmatprep.subr.bf16.mxu0 %v1282
    %1605 = vmatpush1.bf16.msra.mxu0 %v1281
    %1606 = vmatprep.subr.bf16.mxu0 %v1286
    %1607 = vmatpush1.bf16.msra.mxu0 %v1285
    %1608 = vmatprep.subr.bf16.mxu0 %v1290
    %1609 = vmatpush1.bf16.msra.mxu0 %v1289
    %1610 = vmatprep.mubr.bf16.mxu0 %v906
    %1611 = vmatmul.mubr.bf16.gmra.mrb[0].mxu0 %v905
    %v1612 = vpop.f32.mrb[0].mxu0
    %v1613 = vadd.f32 %v1572, %v1612
    %v1614 = vpop.f32.mrb[0].mxu0
    %v1615 = vadd.f32 %v1574, %v1614
    %v1616 = vpop.f32.mrb[0].mxu0
    %v1617 = vpop.f32.mrb[0].mxu0
    %1618 = vdwg.mxu0
    %v1619 = vld [vmem:[%s5] sm:$0xf]
    %v1621 = vlaneseq
    %v1622 = vshrl.u32 %v1621, 7
    %v1623 = vsub.s32 0, %v1622
    %v1624 = vrot.slane %v1619, %v1623
    %v1625 = vlaneseq
    %v1626 = vshrl.u32 %v1625, 7
    %v1627 = vsub.s32 1, %v1626
    %v1628 = vrot.slane %v1619, %v1627
    %v1629 = vlaneseq
    %v1630 = vshrl.u32 %v1629, 7
    %v1631 = vsub.s32 2, %v1630
    %v1632 = vrot.slane %v1619, %v1631
    %v1633 = vlaneseq
    %v1634 = vshrl.u32 %v1633, 7
    %v1635 = vsub.s32 3, %v1634
    %v1636 = vrot.slane %v1619, %v1635
    %v1641 = vmul.f32 %v1449, %v1624
    %v1642 = vmul.f32 %v1451, %v1628
    %v1643 = vmul.f32 %v1613, %v1632
    %v1644 = vmul.f32 %v1615, %v1636
    %v1645 = vld [vmem:[%s6] sm:$0xf]
    %v1647 = vlaneseq
    %v1648 = vshrl.u32 %v1647, 7
    %v1649 = vsub.s32 0, %v1648
    %v1650 = vrot.slane %v1645, %v1649
    %v1651 = vlaneseq
    %v1652 = vshrl.u32 %v1651, 7
    %v1653 = vsub.s32 1, %v1652
    %v1654 = vrot.slane %v1645, %v1653
    %v1655 = vlaneseq
    %v1656 = vshrl.u32 %v1655, 7
    %v1657 = vsub.s32 2, %v1656
    %v1658 = vrot.slane %v1645, %v1657
    %v1659 = vlaneseq
    %v1660 = vshrl.u32 %v1659, 7
    %v1661 = vsub.s32 3, %v1660
    %v1662 = vrot.slane %v1645, %v1661
    %v1667 = vadd.f32 %v1641, %v1650
    %v1668 = vadd.f32 %v1642, %v1654
    %v1669 = vadd.f32 %v1643, %v1658
    %v1670 = vadd.f32 %v1644, %v1662
    %v1671 = vmax.f32 %v1667, 0.0
    %v1672 = vmax.f32 %v1668, 0.0
    %v1673 = vmax.f32 %v1669, 0.0
    %v1674 = vmax.f32 %v1670, 0.0
    %v1675 = vld [vmem:[%s7] sm:$0xf]
    %v1677 = vlaneseq
    %v1678 = vshrl.u32 %v1677, 7
    %v1679 = vsub.s32 0, %v1678
    %v1680 = vrot.slane %v1675, %v1679
    %v1681 = vlaneseq
    %v1682 = vshrl.u32 %v1681, 7
    %v1683 = vsub.s32 1, %v1682
    %v1684 = vrot.slane %v1675, %v1683
    %v1685 = vlaneseq
    %v1686 = vshrl.u32 %v1685, 7
    %v1687 = vsub.s32 2, %v1686
    %v1688 = vrot.slane %v1675, %v1687
    %v1689 = vlaneseq
    %v1690 = vshrl.u32 %v1689, 7
    %v1691 = vsub.s32 3, %v1690
    %v1692 = vrot.slane %v1675, %v1691
    %v1697 = vmul.f32 %v1671, %v1680
    %v1698 = vmul.f32 %v1672, %v1684
    %v1699 = vmul.f32 %v1673, %v1688
    %v1700 = vmul.f32 %v1674, %v1692
    %vm1701 = vcmask 1041408
    %v1702 = vsel %vm1701, %v1697, 0.0
    %v1703 = vsel %vm1701, %v1698, 0.0
    %v1704 = vadd.f32 %v1702, %v1703
    %v1705 = vsel %vm1701, %v1699, 0.0
    %v1706 = vadd.f32 %v1704, %v1705
    %v1707 = vsel %vm1701, %v1700, 0.0
    %v1708 = vadd.f32 %v1706, %v1707
    %1709 = vadd.xlane.f32.xlu0 %v1708
    %v1710 = vpop.xlane.xlu0 %1709
    %s1711 = sld [smem:[#allocation3]]
    %v1712 = vstv %s1711
    %v1713 = vadd.f32 %v1710, %v1712
    %vm1714 = vcmask 1024
    %1715 = vst.msk [vmem:[%s9] sm:$0x3] %vm1714, %v1713
    // Predicated region
    $region58: #{tpu_custom_call.1} parent=1 // pred_check
      _
    $region59: #{tpu_custom_call.1} parent=1 // pred_check_branch
      %1717 = sbr.rel (0) target = $region61
    $region60: #{tpu_custom_call.1} parent=1 // pred_region
      _
    $region61: #{tpu_custom_call.1} parent=1 // pred_fallthru
      _
    // Predicated region
    $region62: #{tpu_custom_call.1} parent=1 // pred_check
      _
    $region63: #{tpu_custom_call.1} parent=1 // pred_check_branch
      %1719 = sbr.rel (0) target = $region65
    $region64: #{tpu_custom_call.1} parent=1 // pred_region
      _
    $region65: #{tpu_custom_call.1} parent=1 // pred_fallthru
      _
    %1720 = vsyncpa [#allocation5], 1
    %1721 = vsyncpa [#allocation7], 1
    %1722 = vsyncpa [#allocation10], 1

</llo_original>
